<compile_context>
chip_gen: v7x
topology: tpu7x:2x2x1
jax: 0.10.0
libtpu: 0.0.40
codegen_flags: <defaults>
</compile_context>

<pallas_src>
import functools

import jax
import jax.numpy as jnp
from jax.experimental import pallas as pl
from jax.experimental.pallas import tpu as pltpu  # noqa: F401  (TPU backend)


D_PAD = 128  # lane-dense feature width (one full vreg lane extent)


# ---------------------------------------------------------------------------
# Pallas kernel: all GraphSage layers fused, single whole-array invocation
# ---------------------------------------------------------------------------
def _graphsage_fused_kernel(a_ref, h_ref, wh_ref, wc_ref, b_ref, o_ref, *,
                            douts):
    """Fused GraphSage forward.

    a_ref  : (N, N)            f32   row-normalized adjacency (cast in-kernel)
    h_ref  : (N, D_PAD)        bf16  zero-padded node features
    wh_ref : (L, D_PAD, D_PAD) bf16  padded, pre-transposed W[:, :din].T
    wc_ref : (L, D_PAD, D_PAD) bf16  padded, pre-transposed W[:, din:].T
    b_ref  : (L, 1, D_PAD)     f32   padded biases
    o_ref  : (N, D_PAD)        f32   output (real classes in first lanes)
    """
    a = a_ref[...].astype(jnp.bfloat16)   # one small VPU cast, 16 KiB tile
    h = h_ref[...]                        # (N, D_PAD) bf16
    _, dp = h.shape
    lane = jax.lax.broadcasted_iota(jnp.int32, (1, dp), 1)
    n_layers = len(douts)

    for l, dout in enumerate(douts):      # statically unrolled (3 layers)
        is_last = (l == n_layers - 1)

        # Mean aggregation over in-neighbours (MXU, bf16 in / f32 acc).
        c = jnp.dot(a, h, preferred_element_type=jnp.float32)
        c = c.astype(jnp.bfloat16)

        # Bundler linear: [h, c] @ W^T + b as two accumulating MXU matmuls
        # (no lane-axis concat, f32 accumulation).
        z = (jnp.dot(h, wh_ref[l], preferred_element_type=jnp.float32)
             + jnp.dot(c, wc_ref[l], preferred_element_type=jnp.float32)
             + b_ref[l])                                   # (N, D_PAD) f32

        # F.normalize(p=2, dim=1): z / max(||z||, 1e-12).  Padded lanes of z
        # are exactly zero (zero weight cols + zero bias), so the full-lane
        # sum equals the true-dout sum.
        sumsq = jnp.sum(z * z, axis=-1, keepdims=True)
        z = z * jax.lax.rsqrt(jnp.maximum(sumsq, 1e-24))

        # LayerNorm over the true dout lanes, no affine, eps=1e-5.
        inv_d = 1.0 / float(dout)
        if not is_last:
            z = jnp.maximum(z, 0.0)       # hidden layers: ReLU before LN
            mu = jnp.sum(z, axis=-1, keepdims=True) * inv_d
            var = jnp.sum(z * z, axis=-1, keepdims=True) * inv_d - mu * mu
        else:
            # Last layer has no ReLU: after L2 normalization sum(z*z) == 1
            # over the true lanes, so E[z^2] = 1/dout — skip one reduction.
            mu = jnp.sum(z, axis=-1, keepdims=True) * inv_d
            var = inv_d - mu * mu
        z = (z - mu) * jax.lax.rsqrt(var + 1e-5)

        if not is_last:
            # Keep padded lanes exactly zero so the next layer's stats stay
            # exact, then feed the MXU as bf16.
            z = jnp.where(lane < dout, z, 0.0)
            h = z.astype(jnp.bfloat16)
        else:
            # Padded lanes are sliced away by the wrapper; no mask needed.
            o_ref[...] = z.astype(o_ref.dtype)


# ---------------------------------------------------------------------------
# One-time preprocessing (hoisted out of the per-call hot path)
# ---------------------------------------------------------------------------
def prep_graphsage_params(params):
    """Split the Bundler linear into W_h / W_c halves, transpose, pad to 128
    lanes, cast to bf16 and stack into MXU-ready tensors (+ f32 biases)."""
    n_layers = len(params)
    wh = jnp.zeros((n_layers, D_PAD, D_PAD), jnp.float32)
    wc = jnp.zeros((n_layers, D_PAD, D_PAD), jnp.float32)
    b_stack = jnp.zeros((n_layers, 1, D_PAD), jnp.float32)
    douts = []
    for l, (w, b) in enumerate(params):
        dout, two_din = w.shape
        din = two_din // 2
        assert din <= D_PAD and dout <= D_PAD
        wh = wh.at[l, :din, :dout].set(w[:, :din].T)   # h half of the concat
        wc = wc.at[l, :din, :dout].set(w[:, din:].T)   # c half of the concat
        b_stack = b_stack.at[l, 0, :dout].set(b)
        douts.append(int(dout))
    return (wh.astype(jnp.bfloat16), wc.astype(jnp.bfloat16), b_stack,
            tuple(douts))


def prep_features(features):
    """Pad node features to a lane-dense (N, 128) bf16 slab, once at init."""
    n, in_feats = features.shape
    assert in_feats <= D_PAD
    h_pad = jnp.zeros((n, D_PAD), jnp.bfloat16)
    return h_pad.at[:, :in_feats].set(features.astype(jnp.bfloat16))


# ---------------------------------------------------------------------------
# Forward pass: a single grid-less pallas_call for the whole network
# ---------------------------------------------------------------------------
def graphsage_forward(a_norm, h_pad, wh, wc, b_stack, douts):
    n = h_pad.shape[0]
    n_classes = douts[-1]

    kernel = functools.partial(_graphsage_fused_kernel, douts=douts)

    # No grid, no BlockSpecs: the whole (tiny) working set — ~260 KiB — is
    # DMA'd into VMEM once and the body runs a single time.
    out_pad = pl.pallas_call(
        kernel,
        out_shape=jax.ShapeDtypeStruct((n, D_PAD), jnp.float32),
    )(a_norm.astype(jnp.float32), h_pad, wh, wc, b_stack)

    return out_pad[:, :n_classes]


# ---------------------------------------------------------------------------
# Parameter init (mirrors Bundler.__init__: Linear(in*2, out),
# xavier_uniform_(gain=calculate_gain('relu')))
# ---------------------------------------------------------------------------
def init_graphsage_params(key, in_feats, n_hidden, n_classes, n_layers):
    dims = [(in_feats, n_hidden)]
    for _ in range(n_layers - 1):
        dims.append((n_hidden, n_hidden))
    dims.append((n_hidden, n_classes))

    params = []
    gain = jnp.sqrt(2.0)  # calculate_gain('relu')
    for (din, dout) in dims:
        key, kw, kb = jax.random.split(key, 3)
        fan_in, fan_out = 2 * din, dout
        bound = gain * jnp.sqrt(6.0 / (fan_in + fan_out))
        w = jax.random.uniform(kw, (dout, 2 * din), jnp.float32, -bound, bound)
        b_bound = 1.0 / jnp.sqrt(fan_in)
        b = jax.random.uniform(kb, (dout,), jnp.float32, -b_bound, b_bound)
        params.append((w, b))
    return params


# ---------------------------------------------------------------------------
# main
# ---------------------------------------------------------------------------
if __name__ == "__main__":
    # TODO(synk): dropout is identity (inference); 'maxpool' and 'lstm'
    # aggregators are not implemented — the 'mean' aggregator is used.
    key = jax.random.PRNGKey(0)

    N = 64          # number of graph nodes
    in_feats = 16
    n_hidden = 32
    n_classes = 8
    n_layers = 2    # -> 3 GraphSageLayers total (matches the PyTorch ctor)

    k_feat, k_adj, k_param = jax.random.split(key, 3)

    # Node features.
    features = jax.random.normal(k_feat, (N, in_feats), jnp.float32)

    # Deterministic directed graph: random edges + a ring so deg(v) >= 1.
    adj = (jax.random.uniform(k_adj, (N, N)) < 0.1).astype(jnp.float32)
    adj = adj * (1.0 - jnp.eye(N, dtype=jnp.float32))          # no self loops
    ring = jnp.roll(jnp.eye(N, dtype=jnp.float32), 1, axis=1)  # edge v <- v+1
    adj = jnp.maximum(adj, ring)
    deg = jnp.sum(adj, axis=1, keepdims=True)                  # in-degree
    a_norm = adj / deg                                         # mean aggregation

    params = init_graphsage_params(k_param, in_feats, n_hidden, n_classes,
                                   n_layers)

    # One-time preprocessing (hoisted out of the per-call hot path).
    wh, wc, b_stack, douts = prep_graphsage_params(params)
    h_pad = prep_features(features)

    fwd = jax.jit(
        lambda a, h, wh_, wc_, b_: graphsage_forward(a, h, wh_, wc_, b_, douts))
    out = fwd(a_norm, h_pad, wh, wc, b_stack)
    out = jax.block_until_ready(out)

    assert out.shape == (N, n_classes), out.shape
    assert bool(jnp.all(jnp.isfinite(out)))
    print("KERNEL_OK")
</pallas_src>

<mosaic_0001>
module attributes {stable_mosaic.version = 11 : i64} {
  func.func @_graphsage_fused_kernel(%arg0: memref<64x64xf32, #tpu.memory_space<vmem>>, %arg1: memref<64x128xbf16, #tpu.memory_space<vmem>>, %arg2: memref<3x128x128xbf16, #tpu.memory_space<vmem>>, %arg3: memref<3x128x128xbf16, #tpu.memory_space<vmem>>, %arg4: memref<3x1x128xf32, #tpu.memory_space<vmem>>, %arg5: memref<64x128xf32, #tpu.memory_space<vmem>>) attributes {dimension_semantics = [], scalar_prefetch = 0 : i64, scratch_operands = 0 : i64, tpu.core_type = #tpu.core_type<tc>} {
    %c0 = arith.constant 0 : index
    %c0_0 = arith.constant 0 : index
    %0 = vector.load %arg0[%c0, %c0_0] : memref<64x64xf32, #tpu.memory_space<vmem>>, vector<64x64xf32>
    %1 = arith.truncf %0 : vector<64x64xf32> to vector<64x64xbf16>
    %c0_1 = arith.constant 0 : index
    %c0_2 = arith.constant 0 : index
    %2 = vector.load %arg1[%c0_1, %c0_2] : memref<64x128xbf16, #tpu.memory_space<vmem>>, vector<64x128xbf16>
    %3 = tpu.iota {dimensions = array<i32: 1>} : vector<1x128xi32>
    %cst = arith.constant dense<0.000000e+00> : vector<64x128xf32>
    %4 = tpu.matmul %1, %2, %cst {dimension_numbers = #tpu.dot_dimension_numbers<[1], [0], [0], [1], [0, 0, 1, 1], [], []>} : vector<64x64xbf16>, vector<64x128xbf16>, vector<64x128xf32> -> vector<64x128xf32>
    %5 = arith.truncf %4 : vector<64x128xf32> to vector<64x128xbf16>
    %c0_3 = arith.constant 0 : index
    %c0_4 = arith.constant 0 : index
    %c0_5 = arith.constant 0 : index
    %6 = vector.load %arg2[%c0_3, %c0_4, %c0_5] : memref<3x128x128xbf16, #tpu.memory_space<vmem>>, vector<1x128x128xbf16>
    %7 = vector.shape_cast %6 : vector<1x128x128xbf16> to vector<128x128xbf16>
    %cst_6 = arith.constant dense<0.000000e+00> : vector<64x128xf32>
    %8 = tpu.matmul %2, %7, %cst_6 {dimension_numbers = #tpu.dot_dimension_numbers<[1], [0], [0], [1], [0, 0, 1, 1], [], []>} : vector<64x128xbf16>, vector<128x128xbf16>, vector<64x128xf32> -> vector<64x128xf32>
    %c0_7 = arith.constant 0 : index
    %c0_8 = arith.constant 0 : index
    %c0_9 = arith.constant 0 : index
    %9 = vector.load %arg3[%c0_7, %c0_8, %c0_9] : memref<3x128x128xbf16, #tpu.memory_space<vmem>>, vector<1x128x128xbf16>
    %10 = vector.shape_cast %9 : vector<1x128x128xbf16> to vector<128x128xbf16>
    %cst_10 = arith.constant dense<0.000000e+00> : vector<64x128xf32>
    %11 = tpu.matmul %5, %10, %cst_10 {dimension_numbers = #tpu.dot_dimension_numbers<[1], [0], [0], [1], [0, 0, 1, 1], [], []>} : vector<64x128xbf16>, vector<128x128xbf16>, vector<64x128xf32> -> vector<64x128xf32>
    %12 = arith.addf %8, %11 : vector<64x128xf32>
    %c0_11 = arith.constant 0 : index
    %c0_12 = arith.constant 0 : index
    %c0_13 = arith.constant 0 : index
    %13 = vector.load %arg4[%c0_11, %c0_12, %c0_13] : memref<3x1x128xf32, #tpu.memory_space<vmem>>, vector<1x1x128xf32>
    %14 = vector.shape_cast %13 : vector<1x1x128xf32> to vector<1x128xf32>
    %15 = vector.broadcast %14 : vector<1x128xf32> to vector<64x128xf32>
    %16 = arith.addf %12, %15 : vector<64x128xf32>
    %17 = arith.mulf %16, %16 : vector<64x128xf32>
    %cst_14 = arith.constant dense<0.000000e+00> : vector<64xf32>
    %18 = vector.multi_reduction <add>, %17, %cst_14 [1] : vector<64x128xf32> to vector<64xf32>
    %19 = vector.shape_cast %18 : vector<64xf32> to vector<64x1xf32>
    %cst_15 = arith.constant 1.000000e-24 : f32
    %20 = vector.broadcast %cst_15 : f32 to vector<64x1xf32>
    %21 = arith.maximumf %19, %20 : vector<64x1xf32>
    %22 = math.rsqrt %21 : vector<64x1xf32>
    %23 = vector.broadcast %22 : vector<64x1xf32> to vector<64x128xf32>
    %24 = arith.mulf %16, %23 : vector<64x128xf32>
    %cst_16 = arith.constant 0.000000e+00 : f32
    %25 = vector.broadcast %cst_16 : f32 to vector<64x128xf32>
    %26 = arith.maximumf %24, %25 : vector<64x128xf32>
    %cst_17 = arith.constant dense<0.000000e+00> : vector<64xf32>
    %27 = vector.multi_reduction <add>, %26, %cst_17 [1] : vector<64x128xf32> to vector<64xf32>
    %28 = vector.shape_cast %27 : vector<64xf32> to vector<64x1xf32>
    %cst_18 = arith.constant 3.125000e-02 : f32
    %29 = vector.broadcast %cst_18 : f32 to vector<64x1xf32>
    %30 = arith.mulf %28, %29 : vector<64x1xf32>
    %31 = arith.mulf %26, %26 : vector<64x128xf32>
    %cst_19 = arith.constant dense<0.000000e+00> : vector<64xf32>
    %32 = vector.multi_reduction <add>, %31, %cst_19 [1] : vector<64x128xf32> to vector<64xf32>
    %33 = vector.shape_cast %32 : vector<64xf32> to vector<64x1xf32>
    %cst_20 = arith.constant 3.125000e-02 : f32
    %34 = vector.broadcast %cst_20 : f32 to vector<64x1xf32>
    %35 = arith.mulf %33, %34 : vector<64x1xf32>
    %36 = arith.mulf %30, %30 : vector<64x1xf32>
    %37 = arith.subf %35, %36 : vector<64x1xf32>
    %38 = vector.broadcast %30 : vector<64x1xf32> to vector<64x128xf32>
    %39 = arith.subf %26, %38 : vector<64x128xf32>
    %cst_21 = arith.constant 9.99999974E-6 : f32
    %40 = vector.broadcast %cst_21 : f32 to vector<64x1xf32>
    %41 = arith.addf %37, %40 : vector<64x1xf32>
    %42 = math.rsqrt %41 : vector<64x1xf32>
    %43 = vector.broadcast %42 : vector<64x1xf32> to vector<64x128xf32>
    %44 = arith.mulf %39, %43 : vector<64x128xf32>
    %c32_i32 = arith.constant 32 : i32
    %45 = vector.broadcast %c32_i32 : i32 to vector<1x128xi32>
    %46 = arith.cmpi slt, %3, %45 : vector<1x128xi32>
    %cst_22 = arith.constant 0.000000e+00 : f32
    %47 = vector.shape_cast %46 : vector<1x128xi1> to vector<1x128xi1>
    %48 = vector.broadcast %47 : vector<1x128xi1> to vector<64x128xi1>
    %49 = vector.broadcast %cst_22 : f32 to vector<64x128xf32>
    %50 = arith.select %48, %44, %49 : vector<64x128xi1>, vector<64x128xf32>
    %51 = arith.truncf %50 : vector<64x128xf32> to vector<64x128xbf16>
    %cst_23 = arith.constant dense<0.000000e+00> : vector<64x128xf32>
    %52 = tpu.matmul %1, %51, %cst_23 {dimension_numbers = #tpu.dot_dimension_numbers<[1], [0], [0], [1], [0, 0, 1, 1], [], []>} : vector<64x64xbf16>, vector<64x128xbf16>, vector<64x128xf32> -> vector<64x128xf32>
    %53 = arith.truncf %52 : vector<64x128xf32> to vector<64x128xbf16>
    %c1 = arith.constant 1 : index
    %c0_24 = arith.constant 0 : index
    %c0_25 = arith.constant 0 : index
    %54 = vector.load %arg2[%c1, %c0_24, %c0_25] : memref<3x128x128xbf16, #tpu.memory_space<vmem>>, vector<1x128x128xbf16>
    %55 = vector.shape_cast %54 : vector<1x128x128xbf16> to vector<128x128xbf16>
    %cst_26 = arith.constant dense<0.000000e+00> : vector<64x128xf32>
    %56 = tpu.matmul %51, %55, %cst_26 {dimension_numbers = #tpu.dot_dimension_numbers<[1], [0], [0], [1], [0, 0, 1, 1], [], []>} : vector<64x128xbf16>, vector<128x128xbf16>, vector<64x128xf32> -> vector<64x128xf32>
    %c1_27 = arith.constant 1 : index
    %c0_28 = arith.constant 0 : index
    %c0_29 = arith.constant 0 : index
    %57 = vector.load %arg3[%c1_27, %c0_28, %c0_29] : memref<3x128x128xbf16, #tpu.memory_space<vmem>>, vector<1x128x128xbf16>
    %58 = vector.shape_cast %57 : vector<1x128x128xbf16> to vector<128x128xbf16>
    %cst_30 = arith.constant dense<0.000000e+00> : vector<64x128xf32>
    %59 = tpu.matmul %53, %58, %cst_30 {dimension_numbers = #tpu.dot_dimension_numbers<[1], [0], [0], [1], [0, 0, 1, 1], [], []>} : vector<64x128xbf16>, vector<128x128xbf16>, vector<64x128xf32> -> vector<64x128xf32>
    %60 = arith.addf %56, %59 : vector<64x128xf32>
    %c1_31 = arith.constant 1 : index
    %c0_32 = arith.constant 0 : index
    %c0_33 = arith.constant 0 : index
    %61 = vector.load %arg4[%c1_31, %c0_32, %c0_33] : memref<3x1x128xf32, #tpu.memory_space<vmem>>, vector<1x1x128xf32>
    %62 = vector.shape_cast %61 : vector<1x1x128xf32> to vector<1x128xf32>
    %63 = vector.broadcast %62 : vector<1x128xf32> to vector<64x128xf32>
    %64 = arith.addf %60, %63 : vector<64x128xf32>
    %65 = arith.mulf %64, %64 : vector<64x128xf32>
    %cst_34 = arith.constant dense<0.000000e+00> : vector<64xf32>
    %66 = vector.multi_reduction <add>, %65, %cst_34 [1] : vector<64x128xf32> to vector<64xf32>
    %67 = vector.shape_cast %66 : vector<64xf32> to vector<64x1xf32>
    %cst_35 = arith.constant 1.000000e-24 : f32
    %68 = vector.broadcast %cst_35 : f32 to vector<64x1xf32>
    %69 = arith.maximumf %67, %68 : vector<64x1xf32>
    %70 = math.rsqrt %69 : vector<64x1xf32>
    %71 = vector.broadcast %70 : vector<64x1xf32> to vector<64x128xf32>
    %72 = arith.mulf %64, %71 : vector<64x128xf32>
    %cst_36 = arith.constant 0.000000e+00 : f32
    %73 = vector.broadcast %cst_36 : f32 to vector<64x128xf32>
    %74 = arith.maximumf %72, %73 : vector<64x128xf32>
    %cst_37 = arith.constant dense<0.000000e+00> : vector<64xf32>
    %75 = vector.multi_reduction <add>, %74, %cst_37 [1] : vector<64x128xf32> to vector<64xf32>
    %76 = vector.shape_cast %75 : vector<64xf32> to vector<64x1xf32>
    %cst_38 = arith.constant 3.125000e-02 : f32
    %77 = vector.broadcast %cst_38 : f32 to vector<64x1xf32>
    %78 = arith.mulf %76, %77 : vector<64x1xf32>
    %79 = arith.mulf %74, %74 : vector<64x128xf32>
    %cst_39 = arith.constant dense<0.000000e+00> : vector<64xf32>
    %80 = vector.multi_reduction <add>, %79, %cst_39 [1] : vector<64x128xf32> to vector<64xf32>
    %81 = vector.shape_cast %80 : vector<64xf32> to vector<64x1xf32>
    %cst_40 = arith.constant 3.125000e-02 : f32
    %82 = vector.broadcast %cst_40 : f32 to vector<64x1xf32>
    %83 = arith.mulf %81, %82 : vector<64x1xf32>
    %84 = arith.mulf %78, %78 : vector<64x1xf32>
    %85 = arith.subf %83, %84 : vector<64x1xf32>
    %86 = vector.broadcast %78 : vector<64x1xf32> to vector<64x128xf32>
    %87 = arith.subf %74, %86 : vector<64x128xf32>
    %cst_41 = arith.constant 9.99999974E-6 : f32
    %88 = vector.broadcast %cst_41 : f32 to vector<64x1xf32>
    %89 = arith.addf %85, %88 : vector<64x1xf32>
    %90 = math.rsqrt %89 : vector<64x1xf32>
    %91 = vector.broadcast %90 : vector<64x1xf32> to vector<64x128xf32>
    %92 = arith.mulf %87, %91 : vector<64x128xf32>
    %c32_i32_42 = arith.constant 32 : i32
    %93 = vector.broadcast %c32_i32_42 : i32 to vector<1x128xi32>
    %94 = arith.cmpi slt, %3, %93 : vector<1x128xi32>
    %cst_43 = arith.constant 0.000000e+00 : f32
    %95 = vector.shape_cast %94 : vector<1x128xi1> to vector<1x128xi1>
    %96 = vector.broadcast %95 : vector<1x128xi1> to vector<64x128xi1>
    %97 = vector.broadcast %cst_43 : f32 to vector<64x128xf32>
    %98 = arith.select %96, %92, %97 : vector<64x128xi1>, vector<64x128xf32>
    %99 = arith.truncf %98 : vector<64x128xf32> to vector<64x128xbf16>
    %cst_44 = arith.constant dense<0.000000e+00> : vector<64x128xf32>
    %100 = tpu.matmul %1, %99, %cst_44 {dimension_numbers = #tpu.dot_dimension_numbers<[1], [0], [0], [1], [0, 0, 1, 1], [], []>} : vector<64x64xbf16>, vector<64x128xbf16>, vector<64x128xf32> -> vector<64x128xf32>
    %101 = arith.truncf %100 : vector<64x128xf32> to vector<64x128xbf16>
    %c2 = arith.constant 2 : index
    %c0_45 = arith.constant 0 : index
    %c0_46 = arith.constant 0 : index
    %102 = vector.load %arg2[%c2, %c0_45, %c0_46] : memref<3x128x128xbf16, #tpu.memory_space<vmem>>, vector<1x128x128xbf16>
    %103 = vector.shape_cast %102 : vector<1x128x128xbf16> to vector<128x128xbf16>
    %cst_47 = arith.constant dense<0.000000e+00> : vector<64x128xf32>
    %104 = tpu.matmul %99, %103, %cst_47 {dimension_numbers = #tpu.dot_dimension_numbers<[1], [0], [0], [1], [0, 0, 1, 1], [], []>} : vector<64x128xbf16>, vector<128x128xbf16>, vector<64x128xf32> -> vector<64x128xf32>
    %c2_48 = arith.constant 2 : index
    %c0_49 = arith.constant 0 : index
    %c0_50 = arith.constant 0 : index
    %105 = vector.load %arg3[%c2_48, %c0_49, %c0_50] : memref<3x128x128xbf16, #tpu.memory_space<vmem>>, vector<1x128x128xbf16>
    %106 = vector.shape_cast %105 : vector<1x128x128xbf16> to vector<128x128xbf16>
    %cst_51 = arith.constant dense<0.000000e+00> : vector<64x128xf32>
    %107 = tpu.matmul %101, %106, %cst_51 {dimension_numbers = #tpu.dot_dimension_numbers<[1], [0], [0], [1], [0, 0, 1, 1], [], []>} : vector<64x128xbf16>, vector<128x128xbf16>, vector<64x128xf32> -> vector<64x128xf32>
    %108 = arith.addf %104, %107 : vector<64x128xf32>
    %c2_52 = arith.constant 2 : index
    %c0_53 = arith.constant 0 : index
    %c0_54 = arith.constant 0 : index
    %109 = vector.load %arg4[%c2_52, %c0_53, %c0_54] : memref<3x1x128xf32, #tpu.memory_space<vmem>>, vector<1x1x128xf32>
    %110 = vector.shape_cast %109 : vector<1x1x128xf32> to vector<1x128xf32>
    %111 = vector.broadcast %110 : vector<1x128xf32> to vector<64x128xf32>
    %112 = arith.addf %108, %111 : vector<64x128xf32>
    %113 = arith.mulf %112, %112 : vector<64x128xf32>
    %cst_55 = arith.constant dense<0.000000e+00> : vector<64xf32>
    %114 = vector.multi_reduction <add>, %113, %cst_55 [1] : vector<64x128xf32> to vector<64xf32>
    %115 = vector.shape_cast %114 : vector<64xf32> to vector<64x1xf32>
    %cst_56 = arith.constant 1.000000e-24 : f32
    %116 = vector.broadcast %cst_56 : f32 to vector<64x1xf32>
    %117 = arith.maximumf %115, %116 : vector<64x1xf32>
    %118 = math.rsqrt %117 : vector<64x1xf32>
    %119 = vector.broadcast %118 : vector<64x1xf32> to vector<64x128xf32>
    %120 = arith.mulf %112, %119 : vector<64x128xf32>
    %cst_57 = arith.constant dense<0.000000e+00> : vector<64xf32>
    %121 = vector.multi_reduction <add>, %120, %cst_57 [1] : vector<64x128xf32> to vector<64xf32>
    %122 = vector.shape_cast %121 : vector<64xf32> to vector<64x1xf32>
    %cst_58 = arith.constant 1.250000e-01 : f32
    %123 = vector.broadcast %cst_58 : f32 to vector<64x1xf32>
    %124 = arith.mulf %122, %123 : vector<64x1xf32>
    %125 = arith.mulf %124, %124 : vector<64x1xf32>
    %cst_59 = arith.constant 1.250000e-01 : f32
    %126 = vector.broadcast %cst_59 : f32 to vector<64x1xf32>
    %127 = arith.subf %126, %125 : vector<64x1xf32>
    %128 = vector.broadcast %124 : vector<64x1xf32> to vector<64x128xf32>
    %129 = arith.subf %120, %128 : vector<64x128xf32>
    %cst_60 = arith.constant 9.99999974E-6 : f32
    %130 = vector.broadcast %cst_60 : f32 to vector<64x1xf32>
    %131 = arith.addf %127, %130 : vector<64x1xf32>
    %132 = math.rsqrt %131 : vector<64x1xf32>
    %133 = vector.broadcast %132 : vector<64x1xf32> to vector<64x128xf32>
    %134 = arith.mulf %129, %133 : vector<64x128xf32>
    %c0_61 = arith.constant 0 : index
    %c0_62 = arith.constant 0 : index
    %135 = vector.load %arg5[%c0_61, %c0_62] : memref<64x128xf32, #tpu.memory_space<vmem>>, vector<64x128xf32>
    tpu.vector_store %arg5[%c0_61, %c0_62], %134 {strides = array<i32>} : memref<64x128xf32, #tpu.memory_space<vmem>>, vector<64x128xf32>,
    return
  }
}

</mosaic_0001>

<llo_original>
// kernel: _lambda_.1
$region0: #{_lambda_.1}
  #allocation0 [shape = 'u32[]', space=smem, size = 0x4, offset = 0x4, fixed_abs, tag = 'smem constant byte address 0x4 - core index']
  #allocation1 [shape = 'u32[144,128]{1,0:T(1,128)}', space=vmem, size = 0x12000, scoped, tag = 'internal scratch']
  %s0 = inlined_call_operand.hbm [shape: f32[64,64], index: 0, kind: input, shape index: {}]
  %s1 = inlined_call_operand.hbm [shape: bf16[64,128], index: 1, kind: input, shape index: {}]
  %s2 = inlined_call_operand.hbm [shape: bf16[3,128,128], index: 2, kind: input, shape index: {}]
  %s3 = inlined_call_operand.hbm [shape: bf16[3,128,128], index: 3, kind: input, shape index: {}]
  %s4 = inlined_call_operand.vmem [shape: f32[3,1,128], index: 4, kind: input, shape index: {}]
  %s5 = inlined_call_operand.vmem [shape: f32[64,128], index: 5, kind: output, shape index: {}]
  %s6 = sld [smem:[#allocation0]]
  $region46: #{_lambda_.1} parent=0
    _
  %s8 = ssub.s32 1, %s6
  %s9 = scalar_select 0, %s8, %s6
  $region1: #{_lambda_.1} parent=0
    #allocation2 [shape = 'u8[32768]{0}', space=vmem, size = 0x8000, scoped, tag = 'input window, operand 0, single buffered']
    #allocation3 [shape = 's32[1]{0}', space=sflag, size = 0x4, scoped, tag = 'scoped memory for _lambda_.1']
    #allocation4 [shape = 'u8[16384]{0}', space=vmem, size = 0x4000, scoped, tag = 'input window, operand 1, single buffered']
    #allocation5 [shape = 's32[1]{0}', space=sflag, size = 0x4, scoped, tag = 'scoped memory for _lambda_.1']
    #allocation6 [shape = 'u8[98304]{0}', space=vmem, size = 0x18000, scoped, tag = 'input window, operand 2, single buffered']
    #allocation7 [shape = 'u8[98304]{0}', space=vmem, size = 0x18000, scoped, tag = 'input window, operand 3, single buffered']
    #allocation8 [shape = 's32[1]{0}', space=sflag, size = 0x4, scoped, tag = 'scoped memory for _lambda_.1']
    %10 = vsyncpa [#allocation3], 0
    %11 = vsyncpa [#allocation5], 0
    %12 = vsyncpa [#allocation8], 0
    // Predicated region
    $region2: #{_lambda_.1} parent=1 // pred_check
      _
    $region3: #{_lambda_.1} parent=1 // pred_check_branch
      %14 = sbr.rel (0) target = $region5
    $region4: #{_lambda_.1} parent=1 // pred_region
      %s16 = ssub.s32 1024, 1024
      %17 = vsyncadd [#allocation3], %s16
      %s18 = sshll.u32 [#allocation2], 4
      %s19 = int_to_ptr.vmem [resolvable:$true] %s18
      %24 = dma.hbm_to_vmem [thread:$0]  %s0, 1024, %s19, [#allocation3], 128, 128, 8
    $region5: #{_lambda_.1} parent=1 // pred_fallthru
      _
    // Predicated region
    $region6: #{_lambda_.1} parent=1 // pred_check
      _
    $region7: #{_lambda_.1} parent=1 // pred_check_branch
      %26 = sbr.rel (0) target = $region9
    $region8: #{_lambda_.1} parent=1 // pred_region
      %s28 = ssub.s32 512, 512
      %29 = vsyncadd [#allocation5], %s28
      %s30 = sshll.u32 [#allocation4], 4
      %s31 = int_to_ptr.vmem [resolvable:$true] %s30
      %36 = dma.hbm_to_vmem [thread:$0]  %s1, 512, %s31, [#allocation5], 64, 64, 4
    $region9: #{_lambda_.1} parent=1 // pred_fallthru
      _
    // Predicated region
    $region10: #{_lambda_.1} parent=1 // pred_check
      _
    $region11: #{_lambda_.1} parent=1 // pred_check_branch
      %38 = sbr.rel (0) target = $region13
    $region12: #{_lambda_.1} parent=1 // pred_region
      %s40 = ssub.s32 3072, 3072
      %41 = vsyncadd [#allocation5], %s40
      %s42 = sshll.u32 [#allocation6], 4
      %s43 = int_to_ptr.vmem [resolvable:$true] %s42
      %48 = dma.hbm_to_vmem [thread:$0]  %s2, 3072, %s43, [#allocation5], 64, 64, 4
    $region13: #{_lambda_.1} parent=1 // pred_fallthru
      _
    // Predicated region
    $region14: #{_lambda_.1} parent=1 // pred_check
      _
    $region15: #{_lambda_.1} parent=1 // pred_check_branch
      %50 = sbr.rel (0) target = $region17
    $region16: #{_lambda_.1} parent=1 // pred_region
      %s52 = ssub.s32 3072, 3072
      %53 = vsyncadd [#allocation8], %s52
      %s54 = sshll.u32 [#allocation7], 4
      %s55 = int_to_ptr.vmem [resolvable:$true] %s54
      %60 = dma.hbm_to_vmem [thread:$0]  %s3, 3072, %s55, [#allocation8], 64, 64, 4
    $region17: #{_lambda_.1} parent=1 // pred_fallthru
      _
    // Predicated region
    $region18: #{_lambda_.1} parent=1 // pred_check
      _
    $region19: #{_lambda_.1} parent=1 // pred_check_branch
      %62 = sbr.rel (0) target = $region21
    $region20: #{_lambda_.1} parent=1 // pred_region
      _
    $region21: #{_lambda_.1} parent=1 // pred_fallthru
      _
    // Predicated region
    $region22: #{_lambda_.1} parent=1 // pred_check
      _
    $region23: #{_lambda_.1} parent=1 // pred_check_branch
      %64 = sbr.rel (0) target = $region25
    $region24: #{_lambda_.1} parent=1 // pred_region
      %65 = dma.done [#allocation3], 1024
    $region25: #{_lambda_.1} parent=1 // pred_fallthru
      _
    // Predicated region
    $region26: #{_lambda_.1} parent=1 // pred_check
      _
    $region27: #{_lambda_.1} parent=1 // pred_check_branch
      %67 = sbr.rel (0) target = $region29
    $region28: #{_lambda_.1} parent=1 // pred_region
      %68 = dma.done [#allocation5], 512
    $region29: #{_lambda_.1} parent=1 // pred_fallthru
      _
    // Predicated region
    $region30: #{_lambda_.1} parent=1 // pred_check
      _
    $region31: #{_lambda_.1} parent=1 // pred_check_branch
      %70 = sbr.rel (0) target = $region33
    $region32: #{_lambda_.1} parent=1 // pred_region
      %71 = dma.done [#allocation5], 3072
    $region33: #{_lambda_.1} parent=1 // pred_fallthru
      _
    // Predicated region
    $region34: #{_lambda_.1} parent=1 // pred_check
      _
    $region35: #{_lambda_.1} parent=1 // pred_check_branch
      %73 = sbr.rel (0) target = $region37
    $region36: #{_lambda_.1} parent=1 // pred_region
      %74 = dma.done [#allocation8], 3072
    $region37: #{_lambda_.1} parent=1 // pred_fallthru
      _
    %v76 = vld [vmem:[#allocation2] sm:$0xff]
    %v77 = vld [vmem:[#allocation2 + $0x8] sm:$0xff]
    %v78 = vld [vmem:[#allocation2 + $0x10] sm:$0xff]
    %v79 = vld [vmem:[#allocation2 + $0x18] sm:$0xff]
    %v80 = vld [vmem:[#allocation2 + $0x20] sm:$0xff]
    %v81 = vld [vmem:[#allocation2 + $0x28] sm:$0xff]
    %v82 = vld [vmem:[#allocation2 + $0x30] sm:$0xff]
    %v83 = vld [vmem:[#allocation2 + $0x38] sm:$0xff]
    %v84 = vpack.c.bf16 %v77, %v76
    %v85 = vpack.c.bf16 %v79, %v78
    %v86 = vpack.c.bf16 %v81, %v80
    %v87 = vpack.c.bf16 %v83, %v82
    %v88 = vld [vmem:[#allocation4] sm:$0xf]
    %v89 = vld [vmem:[#allocation4 + $0x4] sm:$0xf]
    %v90 = vld [vmem:[#allocation4 + $0x8] sm:$0xf]
    %v91 = vld [vmem:[#allocation4 + $0xc] sm:$0xf]
    %v92 = vld [vmem:[#allocation4 + $0x10] sm:$0xf]
    %v93 = vld [vmem:[#allocation4 + $0x14] sm:$0xf]
    %v94 = vld [vmem:[#allocation4 + $0x18] sm:$0xf]
    %v95 = vld [vmem:[#allocation4 + $0x1c] sm:$0xf]
    %v96 = vlaneseq
    %v97 = vand.u32 %v96, 127
    %v106 = vunpack.c.l.b16 %v88
    %v107 = vunpack.c.l.b16 %v89
    %v108 = vunpack.c.l.b16 %v90
    %v109 = vunpack.c.l.b16 %v91
    %v110 = vunpack.c.l.b16 %v92
    %v111 = vunpack.c.l.b16 %v93
    %v112 = vunpack.c.l.b16 %v94
    %v113 = vunpack.c.l.b16 %v95
    %v114 = vpack.c.b16 %v107, %v106
    %v115 = vpack.c.b16 %v109, %v108
    %v116 = vpack.c.b16 %v111, %v110
    %v117 = vpack.c.b16 %v113, %v112
    %vm122 = vcmask 523264
    %v124 = vsel %vm122, %v84, 0
    %v127 = vsel %vm122, %v85, 0
    %v130 = vsel %vm122, %v86, 0
    %v133 = vsel %vm122, %v87, 0
    %135 = vmatprep.subr.bf16.mxu0 0
    %136 = vmatpush1.bf16.msra.mxu0 %v114
    %137 = vmatprep.subr.bf16.mxu0 0
    %138 = vmatpush1.bf16.msra.mxu0 %v115
    %139 = vmatprep.subr.bf16.mxu0 0
    %140 = vmatpush1.bf16.msra.mxu0 %v116
    %141 = vmatprep.subr.bf16.mxu0 0
    %142 = vmatpush1.bf16.msra.mxu0 %v117
    %143 = vmatprep.subr.bf16.mxu0 0
    %144 = vmatpush1.bf16.msra.mxu0 0
    %145 = vmatprep.subr.bf16.mxu0 0
    %146 = vmatpush1.bf16.msra.mxu0 0
    %147 = vmatprep.subr.bf16.mxu0 0
    %148 = vmatpush1.bf16.msra.mxu0 0
    %149 = vmatprep.subr.bf16.mxu0 0
    %150 = vmatpush1.bf16.msra.mxu0 0
    %151 = vmatprep.subr.bf16.mxu0 0
    %152 = vmatpush1.bf16.msra.mxu0 0
    %153 = vmatprep.subr.bf16.mxu0 0
    %154 = vmatpush1.bf16.msra.mxu0 0
    %155 = vmatprep.subr.bf16.mxu0 0
    %156 = vmatpush1.bf16.msra.mxu0 0
    %157 = vmatprep.subr.bf16.mxu0 0
    %158 = vmatpush1.bf16.msra.mxu0 0
    %159 = vmatprep.subr.bf16.mxu0 0
    %160 = vmatpush1.bf16.msra.mxu0 0
    %161 = vmatprep.subr.bf16.mxu0 0
    %162 = vmatpush1.bf16.msra.mxu0 0
    %163 = vmatprep.subr.bf16.mxu0 0
    %164 = vmatpush1.bf16.msra.mxu0 0
    %165 = vmatprep.subr.bf16.mxu0 0
    %166 = vmatpush1.bf16.msra.mxu0 0
    %167 = vmatprep.mubr.bf16.mxu0 0
    %168 = vmatmul.mubr.bf16.gmra.mrb[0].mxu0 %v124
    %v169 = vpop.f32.mrb[0].mxu0
    %v170 = vadd.f32 0.0, %v169
    %v171 = vpop.f32.mrb[0].mxu0
    %v172 = vpop.f32.mrb[0].mxu0
    %v173 = vadd.f32 0.0, %v172
    %v174 = vpop.f32.mrb[0].mxu0
    %175 = vmatprep.mubr.bf16.mxu0 0
    %176 = vmatmul.mubr.bf16.gmra.mrb[0].mxu0 %v127
    %v177 = vpop.f32.mrb[0].mxu0
    %v178 = vadd.f32 0.0, %v177
    %v179 = vpop.f32.mrb[0].mxu0
    %v180 = vpop.f32.mrb[0].mxu0
    %v181 = vadd.f32 0.0, %v180
    %v182 = vpop.f32.mrb[0].mxu0
    %183 = vmatprep.mubr.bf16.mxu0 0
    %184 = vmatmul.mubr.bf16.gmra.mrb[0].mxu0 %v130
    %v185 = vpop.f32.mrb[0].mxu0
    %v186 = vadd.f32 0.0, %v185
    %v187 = vpop.f32.mrb[0].mxu0
    %v188 = vpop.f32.mrb[0].mxu0
    %v189 = vadd.f32 0.0, %v188
    %v190 = vpop.f32.mrb[0].mxu0
    %191 = vmatprep.mubr.bf16.mxu0 0
    %192 = vmatmul.mubr.bf16.gmra.mrb[0].mxu0 %v133
    %v193 = vpop.f32.mrb[0].mxu0
    %v194 = vadd.f32 0.0, %v193
    %v195 = vpop.f32.mrb[0].mxu0
    %v196 = vpop.f32.mrb[0].mxu0
    %v197 = vadd.f32 0.0, %v196
    %v198 = vpop.f32.mrb[0].mxu0
    %199 = vdwg.mxu0
    %v200 = vpack.c.bf16 %v173, %v170
    %v201 = vpack.c.bf16 %v181, %v178
    %v202 = vpack.c.bf16 %v189, %v186
    %v203 = vpack.c.bf16 %v197, %v194
    %v204 = vld [vmem:[#allocation6] sm:$0xf]
    %v205 = vld [vmem:[#allocation6 + $0x4] sm:$0xf]
    %v206 = vld [vmem:[#allocation6 + $0x8] sm:$0xf]
    %v207 = vld [vmem:[#allocation6 + $0xc] sm:$0xf]
    %v208 = vld [vmem:[#allocation6 + $0x10] sm:$0xf]
    %v209 = vld [vmem:[#allocation6 + $0x14] sm:$0xf]
    %v210 = vld [vmem:[#allocation6 + $0x18] sm:$0xf]
    %v211 = vld [vmem:[#allocation6 + $0x1c] sm:$0xf]
    %v212 = vld [vmem:[#allocation6 + $0x20] sm:$0xf]
    %v213 = vld [vmem:[#allocation6 + $0x24] sm:$0xf]
    %v214 = vld [vmem:[#allocation6 + $0x28] sm:$0xf]
    %v215 = vld [vmem:[#allocation6 + $0x2c] sm:$0xf]
    %v216 = vld [vmem:[#allocation6 + $0x30] sm:$0xf]
    %v217 = vld [vmem:[#allocation6 + $0x34] sm:$0xf]
    %v218 = vld [vmem:[#allocation6 + $0x38] sm:$0xf]
    %v219 = vld [vmem:[#allocation6 + $0x3c] sm:$0xf]
    %v220 = vld [vmem:[#allocation7] sm:$0xf]
    %v221 = vld [vmem:[#allocation7 + $0x4] sm:$0xf]
    %v222 = vld [vmem:[#allocation7 + $0x8] sm:$0xf]
    %v223 = vld [vmem:[#allocation7 + $0xc] sm:$0xf]
    %v224 = vld [vmem:[#allocation7 + $0x10] sm:$0xf]
    %v225 = vld [vmem:[#allocation7 + $0x14] sm:$0xf]
    %v226 = vld [vmem:[#allocation7 + $0x18] sm:$0xf]
    %v227 = vld [vmem:[#allocation7 + $0x1c] sm:$0xf]
    %v228 = vld [vmem:[#allocation7 + $0x20] sm:$0xf]
    %v229 = vld [vmem:[#allocation7 + $0x24] sm:$0xf]
    %v230 = vld [vmem:[#allocation7 + $0x28] sm:$0xf]
    %v231 = vld [vmem:[#allocation7 + $0x2c] sm:$0xf]
    %v232 = vld [vmem:[#allocation7 + $0x30] sm:$0xf]
    %v233 = vld [vmem:[#allocation7 + $0x34] sm:$0xf]
    %v234 = vld [vmem:[#allocation7 + $0x38] sm:$0xf]
    %v235 = vld [vmem:[#allocation7 + $0x3c] sm:$0xf]
    %v252 = vunpack.c.l.b16 %v220
    %v253 = vunpack.c.l.b16 %v221
    %v254 = vunpack.c.l.b16 %v222
    %v255 = vunpack.c.l.b16 %v223
    %v256 = vunpack.c.l.b16 %v224
    %v257 = vunpack.c.l.b16 %v225
    %v258 = vunpack.c.l.b16 %v226
    %v259 = vunpack.c.l.b16 %v227
    %v260 = vunpack.c.l.b16 %v228
    %v261 = vunpack.c.l.b16 %v229
    %v262 = vunpack.c.l.b16 %v230
    %v263 = vunpack.c.l.b16 %v231
    %v264 = vunpack.c.l.b16 %v232
    %v265 = vunpack.c.l.b16 %v233
    %v266 = vunpack.c.l.b16 %v234
    %v267 = vunpack.c.l.b16 %v235
    %v268 = vpack.c.b16 %v253, %v252
    %v269 = vpack.c.b16 %v255, %v254
    %v270 = vpack.c.b16 %v257, %v256
    %v271 = vpack.c.b16 %v259, %v258
    %v272 = vpack.c.b16 %v261, %v260
    %v273 = vpack.c.b16 %v263, %v262
    %v274 = vpack.c.b16 %v265, %v264
    %v275 = vpack.c.b16 %v267, %v266
    %284 = vmatprep.subr.bf16.mxu0 0
    %285 = vmatpush1.bf16.msra.mxu0 %v268
    %286 = vmatprep.subr.bf16.mxu0 0
    %287 = vmatpush1.bf16.msra.mxu0 %v269
    %288 = vmatprep.subr.bf16.mxu0 0
    %289 = vmatpush1.bf16.msra.mxu0 %v270
    %290 = vmatprep.subr.bf16.mxu0 0
    %291 = vmatpush1.bf16.msra.mxu0 %v271
    %292 = vmatprep.subr.bf16.mxu0 0
    %293 = vmatpush1.bf16.msra.mxu0 %v272
    %294 = vmatprep.subr.bf16.mxu0 0
    %295 = vmatpush1.bf16.msra.mxu0 %v273
    %296 = vmatprep.subr.bf16.mxu0 0
    %297 = vmatpush1.bf16.msra.mxu0 %v274
    %298 = vmatprep.subr.bf16.mxu0 0
    %299 = vmatpush1.bf16.msra.mxu0 %v275
    %300 = vmatprep.subr.bf16.mxu0 0
    %301 = vmatpush1.bf16.msra.mxu0 0
    %302 = vmatprep.subr.bf16.mxu0 0
    %303 = vmatpush1.bf16.msra.mxu0 0
    %304 = vmatprep.subr.bf16.mxu0 0
    %305 = vmatpush1.bf16.msra.mxu0 0
    %306 = vmatprep.subr.bf16.mxu0 0
    %307 = vmatpush1.bf16.msra.mxu0 0
    %308 = vmatprep.subr.bf16.mxu0 0
    %309 = vmatpush1.bf16.msra.mxu0 0
    %310 = vmatprep.subr.bf16.mxu0 0
    %311 = vmatpush1.bf16.msra.mxu0 0
    %312 = vmatprep.subr.bf16.mxu0 0
    %313 = vmatpush1.bf16.msra.mxu0 0
    %314 = vmatprep.subr.bf16.mxu0 0
    %315 = vmatpush1.bf16.msra.mxu0 0
    %316 = vmatprep.mubr.bf16.mxu0 0
    %317 = vmatmul.mubr.bf16.gmra.mrb[0].mxu0 %v200
    %v318 = vpop.f32.mrb[0].mxu0
    %v319 = vadd.f32 0.0, %v318
    %v320 = vpop.f32.mrb[0].mxu0
    %v321 = vpop.f32.mrb[0].mxu0
    %v322 = vadd.f32 0.0, %v321
    %v323 = vpop.f32.mrb[0].mxu0
    %324 = vmatprep.mubr.bf16.mxu0 0
    %325 = vmatmul.mubr.bf16.gmra.mrb[0].mxu0 %v201
    %v326 = vpop.f32.mrb[0].mxu0
    %v327 = vadd.f32 0.0, %v326
    %v328 = vpop.f32.mrb[0].mxu0
    %v329 = vpop.f32.mrb[0].mxu0
    %v330 = vadd.f32 0.0, %v329
    %v331 = vpop.f32.mrb[0].mxu0
    %332 = vmatprep.mubr.bf16.mxu0 0
    %333 = vmatmul.mubr.bf16.gmra.mrb[0].mxu0 %v202
    %v334 = vpop.f32.mrb[0].mxu0
    %v335 = vadd.f32 0.0, %v334
    %v336 = vpop.f32.mrb[0].mxu0
    %v337 = vpop.f32.mrb[0].mxu0
    %v338 = vadd.f32 0.0, %v337
    %v339 = vpop.f32.mrb[0].mxu0
    %340 = vmatprep.mubr.bf16.mxu0 0
    %341 = vmatmul.mubr.bf16.gmra.mrb[0].mxu0 %v203
    %v342 = vpop.f32.mrb[0].mxu0
    %v343 = vadd.f32 0.0, %v342
    %v344 = vpop.f32.mrb[0].mxu0
    %v345 = vpop.f32.mrb[0].mxu0
    %v346 = vadd.f32 0.0, %v345
    %v347 = vpop.f32.mrb[0].mxu0
    %348 = vdwg.mxu0
    %v365 = vunpack.c.l.b16 %v204
    %v366 = vunpack.c.l.b16 %v205
    %v367 = vunpack.c.l.b16 %v206
    %v368 = vunpack.c.l.b16 %v207
    %v369 = vunpack.c.l.b16 %v208
    %v370 = vunpack.c.l.b16 %v209
    %v371 = vunpack.c.l.b16 %v210
    %v372 = vunpack.c.l.b16 %v211
    %v373 = vunpack.c.l.b16 %v212
    %v374 = vunpack.c.l.b16 %v213
    %v375 = vunpack.c.l.b16 %v214
    %v376 = vunpack.c.l.b16 %v215
    %v377 = vunpack.c.l.b16 %v216
    %v378 = vunpack.c.l.b16 %v217
    %v379 = vunpack.c.l.b16 %v218
    %v380 = vunpack.c.l.b16 %v219
    %v381 = vpack.c.b16 %v366, %v365
    %v382 = vpack.c.b16 %v368, %v367
    %v383 = vpack.c.b16 %v370, %v369
    %v384 = vpack.c.b16 %v372, %v371
    %v385 = vpack.c.b16 %v374, %v373
    %v386 = vpack.c.b16 %v376, %v375
    %v387 = vpack.c.b16 %v378, %v377
    %v388 = vpack.c.b16 %v380, %v379
    %397 = vmatprep.subr.bf16.mxu0 0
    %398 = vmatpush1.bf16.msra.mxu0 %v381
    %399 = vmatprep.subr.bf16.mxu0 0
    %400 = vmatpush1.bf16.msra.mxu0 %v382
    %401 = vmatprep.subr.bf16.mxu0 0
    %402 = vmatpush1.bf16.msra.mxu0 %v383
    %403 = vmatprep.subr.bf16.mxu0 0
    %404 = vmatpush1.bf16.msra.mxu0 %v384
    %405 = vmatprep.subr.bf16.mxu0 0
    %406 = vmatpush1.bf16.msra.mxu0 %v385
    %407 = vmatprep.subr.bf16.mxu0 0
    %408 = vmatpush1.bf16.msra.mxu0 %v386
    %409 = vmatprep.subr.bf16.mxu0 0
    %410 = vmatpush1.bf16.msra.mxu0 %v387
    %411 = vmatprep.subr.bf16.mxu0 0
    %412 = vmatpush1.bf16.msra.mxu0 %v388
    %413 = vmatprep.subr.bf16.mxu0 0
    %414 = vmatpush1.bf16.msra.mxu0 0
    %415 = vmatprep.subr.bf16.mxu0 0
    %416 = vmatpush1.bf16.msra.mxu0 0
    %417 = vmatprep.subr.bf16.mxu0 0
    %418 = vmatpush1.bf16.msra.mxu0 0
    %419 = vmatprep.subr.bf16.mxu0 0
    %420 = vmatpush1.bf16.msra.mxu0 0
    %421 = vmatprep.subr.bf16.mxu0 0
    %422 = vmatpush1.bf16.msra.mxu0 0
    %423 = vmatprep.subr.bf16.mxu0 0
    %424 = vmatpush1.bf16.msra.mxu0 0
    %425 = vmatprep.subr.bf16.mxu0 0
    %426 = vmatpush1.bf16.msra.mxu0 0
    %427 = vmatprep.subr.bf16.mxu0 0
    %428 = vmatpush1.bf16.msra.mxu0 0
    %429 = vmatprep.mubr.bf16.mxu0 0
    %430 = vmatmul.mubr.bf16.gmra.mrb[0].mxu0 %v114
    %v431 = vpop.f32.mrb[0].mxu0
    %v432 = vadd.f32 %v319, %v431
    %v433 = vpop.f32.mrb[0].mxu0
    %v434 = vpop.f32.mrb[0].mxu0
    %v435 = vadd.f32 %v322, %v434
    %v436 = vpop.f32.mrb[0].mxu0
    %437 = vmatprep.mubr.bf16.mxu0 0
    %438 = vmatmul.mubr.bf16.gmra.mrb[0].mxu0 %v115
    %v439 = vpop.f32.mrb[0].mxu0
    %v440 = vadd.f32 %v327, %v439
    %v441 = vpop.f32.mrb[0].mxu0
    %v442 = vpop.f32.mrb[0].mxu0
    %v443 = vadd.f32 %v330, %v442
    %v444 = vpop.f32.mrb[0].mxu0
    %445 = vmatprep.mubr.bf16.mxu0 0
    %446 = vmatmul.mubr.bf16.gmra.mrb[0].mxu0 %v116
    %v447 = vpop.f32.mrb[0].mxu0
    %v448 = vadd.f32 %v335, %v447
    %v449 = vpop.f32.mrb[0].mxu0
    %v450 = vpop.f32.mrb[0].mxu0
    %v451 = vadd.f32 %v338, %v450
    %v452 = vpop.f32.mrb[0].mxu0
    %453 = vmatprep.mubr.bf16.mxu0 0
    %454 = vmatmul.mubr.bf16.gmra.mrb[0].mxu0 %v117
    %v455 = vpop.f32.mrb[0].mxu0
    %v456 = vadd.f32 %v343, %v455
    %v457 = vpop.f32.mrb[0].mxu0
    %v458 = vpop.f32.mrb[0].mxu0
    %v459 = vadd.f32 %v346, %v458
    %v460 = vpop.f32.mrb[0].mxu0
    %461 = vdwg.mxu0
    %v462 = vld [vmem:[%s4] sm:$0x1]
    %v464 = vlaneseq
    %v465 = vshrl.u32 %v464, 7
    %v466 = vsub.s32 0, %v465
    %v467 = vrot.slane %v462, %v466
    %v469 = vadd.f32 %v432, %v467
    %v470 = vadd.f32 %v435, %v467
    %v471 = vadd.f32 %v440, %v467
    %v472 = vadd.f32 %v443, %v467
    %v473 = vadd.f32 %v448, %v467
    %v474 = vadd.f32 %v451, %v467
    %v475 = vadd.f32 %v456, %v467
    %v476 = vadd.f32 %v459, %v467
    %v477 = vmul.f32 %v469, %v469
    %v478 = vmul.f32 %v470, %v470
    %v479 = vmul.f32 %v471, %v471
    %v480 = vmul.f32 %v472, %v472
    %v481 = vmul.f32 %v473, %v473
    %v482 = vmul.f32 %v474, %v474
    %v483 = vmul.f32 %v475, %v475
    %v484 = vmul.f32 %v476, %v476
    %485 = vadd.xlane.f32.xlu0 %v477
    %v486 = vpop.xlane.xlu0 %485
    %487 = vadd.xlane.f32.xlu0 %v478
    %v488 = vpop.xlane.xlu0 %487
    %489 = vadd.xlane.f32.xlu0 %v479
    %v490 = vpop.xlane.xlu0 %489
    %491 = vadd.xlane.f32.xlu0 %v480
    %v492 = vpop.xlane.xlu0 %491
    %493 = vadd.xlane.f32.xlu0 %v481
    %v494 = vpop.xlane.xlu0 %493
    %495 = vadd.xlane.f32.xlu0 %v482
    %v496 = vpop.xlane.xlu0 %495
    %497 = vadd.xlane.f32.xlu0 %v483
    %v498 = vpop.xlane.xlu0 %497
    %499 = vadd.xlane.f32.xlu0 %v484
    %v500 = vpop.xlane.xlu0 %499
    %v501 = vmax.f32 %v486, 1e-24
    %v502 = vmax.f32 %v488, 1e-24
    %v503 = vmax.f32 %v490, 1e-24
    %v504 = vmax.f32 %v492, 1e-24
    %v505 = vmax.f32 %v494, 1e-24
    %v506 = vmax.f32 %v496, 1e-24
    %v507 = vmax.f32 %v498, 1e-24
    %v508 = vmax.f32 %v500, 1e-24
    %v509 = vrsqrt.pop %v501
    %v510 = vrsqrt.pop %v502
    %v511 = vrsqrt.pop %v503
    %v512 = vrsqrt.pop %v504
    %v513 = vrsqrt.pop %v505
    %v514 = vrsqrt.pop %v506
    %v515 = vrsqrt.pop %v507
    %v516 = vrsqrt.pop %v508
    %v517 = vmul.f32 %v469, %v509
    %v518 = vmul.f32 %v470, %v510
    %v519 = vmul.f32 %v471, %v511
    %v520 = vmul.f32 %v472, %v512
    %v521 = vmul.f32 %v473, %v513
    %v522 = vmul.f32 %v474, %v514
    %v523 = vmul.f32 %v475, %v515
    %v524 = vmul.f32 %v476, %v516
    %v525 = vmax.f32 %v517, 0.0
    %v526 = vmax.f32 %v518, 0.0
    %v527 = vmax.f32 %v519, 0.0
    %v528 = vmax.f32 %v520, 0.0
    %v529 = vmax.f32 %v521, 0.0
    %v530 = vmax.f32 %v522, 0.0
    %v531 = vmax.f32 %v523, 0.0
    %v532 = vmax.f32 %v524, 0.0
    %533 = vadd.xlane.f32.xlu0 %v525
    %v534 = vpop.xlane.xlu0 %533
    %535 = vadd.xlane.f32.xlu0 %v526
    %v536 = vpop.xlane.xlu0 %535
    %537 = vadd.xlane.f32.xlu0 %v527
    %v538 = vpop.xlane.xlu0 %537
    %539 = vadd.xlane.f32.xlu0 %v528
    %v540 = vpop.xlane.xlu0 %539
    %541 = vadd.xlane.f32.xlu0 %v529
    %v542 = vpop.xlane.xlu0 %541
    %543 = vadd.xlane.f32.xlu0 %v530
    %v544 = vpop.xlane.xlu0 %543
    %545 = vadd.xlane.f32.xlu0 %v531
    %v546 = vpop.xlane.xlu0 %545
    %547 = vadd.xlane.f32.xlu0 %v532
    %v548 = vpop.xlane.xlu0 %547
    %v549 = vmul.f32 %v534, 0.03125
    %v550 = vmul.f32 %v536, 0.03125
    %v551 = vmul.f32 %v538, 0.03125
    %v552 = vmul.f32 %v540, 0.03125
    %v553 = vmul.f32 %v542, 0.03125
    %v554 = vmul.f32 %v544, 0.03125
    %v555 = vmul.f32 %v546, 0.03125
    %v556 = vmul.f32 %v548, 0.03125
    %v557 = vmul.f32 %v525, %v525
    %v558 = vmul.f32 %v526, %v526
    %v559 = vmul.f32 %v527, %v527
    %v560 = vmul.f32 %v528, %v528
    %v561 = vmul.f32 %v529, %v529
    %v562 = vmul.f32 %v530, %v530
    %v563 = vmul.f32 %v531, %v531
    %v564 = vmul.f32 %v532, %v532
    %565 = vadd.xlane.f32.xlu0 %v557
    %v566 = vpop.xlane.xlu0 %565
    %567 = vadd.xlane.f32.xlu0 %v558
    %v568 = vpop.xlane.xlu0 %567
    %569 = vadd.xlane.f32.xlu0 %v559
    %v570 = vpop.xlane.xlu0 %569
    %571 = vadd.xlane.f32.xlu0 %v560
    %v572 = vpop.xlane.xlu0 %571
    %573 = vadd.xlane.f32.xlu0 %v561
    %v574 = vpop.xlane.xlu0 %573
    %575 = vadd.xlane.f32.xlu0 %v562
    %v576 = vpop.xlane.xlu0 %575
    %577 = vadd.xlane.f32.xlu0 %v563
    %v578 = vpop.xlane.xlu0 %577
    %579 = vadd.xlane.f32.xlu0 %v564
    %v580 = vpop.xlane.xlu0 %579
    %v581 = vmul.f32 %v566, 0.03125
    %v582 = vmul.f32 %v568, 0.03125
    %v583 = vmul.f32 %v570, 0.03125
    %v584 = vmul.f32 %v572, 0.03125
    %v585 = vmul.f32 %v574, 0.03125
    %v586 = vmul.f32 %v576, 0.03125
    %v587 = vmul.f32 %v578, 0.03125
    %v588 = vmul.f32 %v580, 0.03125
    %v589 = vmul.f32 %v549, %v549
    %v590 = vmul.f32 %v550, %v550
    %v591 = vmul.f32 %v551, %v551
    %v592 = vmul.f32 %v552, %v552
    %v593 = vmul.f32 %v553, %v553
    %v594 = vmul.f32 %v554, %v554
    %v595 = vmul.f32 %v555, %v555
    %v596 = vmul.f32 %v556, %v556
    %v597 = vsub.f32 %v581, %v589
    %v598 = vsub.f32 %v582, %v590
    %v599 = vsub.f32 %v583, %v591
    %v600 = vsub.f32 %v584, %v592
    %v601 = vsub.f32 %v585, %v593
    %v602 = vsub.f32 %v586, %v594
    %v603 = vsub.f32 %v587, %v595
    %v604 = vsub.f32 %v588, %v596
    %v605 = vsub.f32 %v525, %v549
    %v606 = vsub.f32 %v526, %v550
    %v607 = vsub.f32 %v527, %v551
    %v608 = vsub.f32 %v528, %v552
    %v609 = vsub.f32 %v529, %v553
    %v610 = vsub.f32 %v530, %v554
    %v611 = vsub.f32 %v531, %v555
    %v612 = vsub.f32 %v532, %v556
    %v613 = vadd.f32 %v597, 1e-05
    %v614 = vadd.f32 %v598, 1e-05
    %v615 = vadd.f32 %v599, 1e-05
    %v616 = vadd.f32 %v600, 1e-05
    %v617 = vadd.f32 %v601, 1e-05
    %v618 = vadd.f32 %v602, 1e-05
    %v619 = vadd.f32 %v603, 1e-05
    %v620 = vadd.f32 %v604, 1e-05
    %v621 = vrsqrt.pop %v613
    %v622 = vrsqrt.pop %v614
    %v623 = vrsqrt.pop %v615
    %v624 = vrsqrt.pop %v616
    %v625 = vrsqrt.pop %v617
    %v626 = vrsqrt.pop %v618
    %v627 = vrsqrt.pop %v619
    %v628 = vrsqrt.pop %v620
    %v629 = vmul.f32 %v605, %v621
    %v630 = vmul.f32 %v606, %v622
    %v631 = vmul.f32 %v607, %v623
    %v632 = vmul.f32 %v608, %v624
    %v633 = vmul.f32 %v609, %v625
    %v634 = vmul.f32 %v610, %v626
    %v635 = vmul.f32 %v611, %v627
    %v636 = vmul.f32 %v612, %v628
    %vm637 = vcmp.lt.s32.totalorder %v97, 32
    %v638 = vsel %vm637, 1, 0
    %vm639 = vcmp.eq.s32.totalorder %v638, 1
    %v640 = vsel %vm639, %v629, 0.0
    %v641 = vsel %vm639, %v630, 0.0
    %v642 = vsel %vm639, %v631, 0.0
    %v643 = vsel %vm639, %v632, 0.0
    %v644 = vsel %vm639, %v633, 0.0
    %v645 = vsel %vm639, %v634, 0.0
    %v646 = vsel %vm639, %v635, 0.0
    %v647 = vsel %vm639, %v636, 0.0
    %v648 = vpack.c.bf16 %v641, %v640
    %v649 = vpack.c.bf16 %v643, %v642
    %v650 = vpack.c.bf16 %v645, %v644
    %v651 = vpack.c.bf16 %v647, %v646
    %652 = vmatprep.subr.bf16.mxu0 0
    %653 = vmatpush1.bf16.msra.mxu0 %v648
    %654 = vmatprep.subr.bf16.mxu0 0
    %655 = vmatpush1.bf16.msra.mxu0 %v649
    %656 = vmatprep.subr.bf16.mxu0 0
    %657 = vmatpush1.bf16.msra.mxu0 %v650
    %658 = vmatprep.subr.bf16.mxu0 0
    %659 = vmatpush1.bf16.msra.mxu0 %v651
    %660 = vmatprep.subr.bf16.mxu0 0
    %661 = vmatpush1.bf16.msra.mxu0 0
    %662 = vmatprep.subr.bf16.mxu0 0
    %663 = vmatpush1.bf16.msra.mxu0 0
    %664 = vmatprep.subr.bf16.mxu0 0
    %665 = vmatpush1.bf16.msra.mxu0 0
    %666 = vmatprep.subr.bf16.mxu0 0
    %667 = vmatpush1.bf16.msra.mxu0 0
    %668 = vmatprep.subr.bf16.mxu0 0
    %669 = vmatpush1.bf16.msra.mxu0 0
    %670 = vmatprep.subr.bf16.mxu0 0
    %671 = vmatpush1.bf16.msra.mxu0 0
    %672 = vmatprep.subr.bf16.mxu0 0
    %673 = vmatpush1.bf16.msra.mxu0 0
    %674 = vmatprep.subr.bf16.mxu0 0
    %675 = vmatpush1.bf16.msra.mxu0 0
    %676 = vmatprep.subr.bf16.mxu0 0
    %677 = vmatpush1.bf16.msra.mxu0 0
    %678 = vmatprep.subr.bf16.mxu0 0
    %679 = vmatpush1.bf16.msra.mxu0 0
    %680 = vmatprep.subr.bf16.mxu0 0
    %681 = vmatpush1.bf16.msra.mxu0 0
    %682 = vmatprep.subr.bf16.mxu0 0
    %683 = vmatpush1.bf16.msra.mxu0 0
    %684 = vmatprep.mubr.bf16.mxu0 0
    %685 = vmatmul.mubr.bf16.gmra.mrb[0].mxu0 %v124
    %v686 = vpop.f32.mrb[0].mxu0
    %v687 = vadd.f32 0.0, %v686
    %v688 = vpop.f32.mrb[0].mxu0
    %v689 = vpop.f32.mrb[0].mxu0
    %v690 = vadd.f32 0.0, %v689
    %v691 = vpop.f32.mrb[0].mxu0
    %692 = vmatprep.mubr.bf16.mxu0 0
    %693 = vmatmul.mubr.bf16.gmra.mrb[0].mxu0 %v127
    %v694 = vpop.f32.mrb[0].mxu0
    %v695 = vadd.f32 0.0, %v694
    %v696 = vpop.f32.mrb[0].mxu0
    %v697 = vpop.f32.mrb[0].mxu0
    %v698 = vadd.f32 0.0, %v697
    %v699 = vpop.f32.mrb[0].mxu0
    %700 = vmatprep.mubr.bf16.mxu0 0
    %701 = vmatmul.mubr.bf16.gmra.mrb[0].mxu0 %v130
    %v702 = vpop.f32.mrb[0].mxu0
    %v703 = vadd.f32 0.0, %v702
    %v704 = vpop.f32.mrb[0].mxu0
    %v705 = vpop.f32.mrb[0].mxu0
    %v706 = vadd.f32 0.0, %v705
    %v707 = vpop.f32.mrb[0].mxu0
    %708 = vmatprep.mubr.bf16.mxu0 0
    %709 = vmatmul.mubr.bf16.gmra.mrb[0].mxu0 %v133
    %v710 = vpop.f32.mrb[0].mxu0
    %v711 = vadd.f32 0.0, %v710
    %v712 = vpop.f32.mrb[0].mxu0
    %v713 = vpop.f32.mrb[0].mxu0
    %v714 = vadd.f32 0.0, %v713
    %v715 = vpop.f32.mrb[0].mxu0
    %716 = vdwg.mxu0
    %v717 = vpack.c.bf16 %v690, %v687
    %v718 = vpack.c.bf16 %v698, %v695
    %v719 = vpack.c.bf16 %v706, %v703
    %v720 = vpack.c.bf16 %v714, %v711
    %s721 = scalar_lea.vmem [#allocation6], 64
    %v722 = vld [vmem:[%s721] sm:$0xf]
    %v723 = vld [vmem:[%s721 + $0x4] sm:$0xf]
    %v724 = vld [vmem:[%s721 + $0x8] sm:$0xf]
    %v725 = vld [vmem:[%s721 + $0xc] sm:$0xf]
    %v726 = vld [vmem:[%s721 + $0x10] sm:$0xf]
    %v727 = vld [vmem:[%s721 + $0x14] sm:$0xf]
    %v728 = vld [vmem:[%s721 + $0x18] sm:$0xf]
    %v729 = vld [vmem:[%s721 + $0x1c] sm:$0xf]
    %v730 = vld [vmem:[%s721 + $0x20] sm:$0xf]
    %v731 = vld [vmem:[%s721 + $0x24] sm:$0xf]
    %v732 = vld [vmem:[%s721 + $0x28] sm:$0xf]
    %v733 = vld [vmem:[%s721 + $0x2c] sm:$0xf]
    %v734 = vld [vmem:[%s721 + $0x30] sm:$0xf]
    %v735 = vld [vmem:[%s721 + $0x34] sm:$0xf]
    %v736 = vld [vmem:[%s721 + $0x38] sm:$0xf]
    %v737 = vld [vmem:[%s721 + $0x3c] sm:$0xf]
    %s738 = scalar_lea.vmem [#allocation7], 64
    %v739 = vld [vmem:[%s738] sm:$0xf]
    %v740 = vld [vmem:[%s738 + $0x4] sm:$0xf]
    %v741 = vld [vmem:[%s738 + $0x8] sm:$0xf]
    %v742 = vld [vmem:[%s738 + $0xc] sm:$0xf]
    %v743 = vld [vmem:[%s738 + $0x10] sm:$0xf]
    %v744 = vld [vmem:[%s738 + $0x14] sm:$0xf]
    %v745 = vld [vmem:[%s738 + $0x18] sm:$0xf]
    %v746 = vld [vmem:[%s738 + $0x1c] sm:$0xf]
    %v747 = vld [vmem:[%s738 + $0x20] sm:$0xf]
    %v748 = vld [vmem:[%s738 + $0x24] sm:$0xf]
    %v749 = vld [vmem:[%s738 + $0x28] sm:$0xf]
    %v750 = vld [vmem:[%s738 + $0x2c] sm:$0xf]
    %v751 = vld [vmem:[%s738 + $0x30] sm:$0xf]
    %v752 = vld [vmem:[%s738 + $0x34] sm:$0xf]
    %v753 = vld [vmem:[%s738 + $0x38] sm:$0xf]
    %v754 = vld [vmem:[%s738 + $0x3c] sm:$0xf]
    %v771 = vunpack.c.l.b16 %v739
    %v772 = vunpack.c.l.b16 %v740
    %v773 = vunpack.c.l.b16 %v741
    %v774 = vunpack.c.l.b16 %v742
    %v775 = vunpack.c.l.b16 %v743
    %v776 = vunpack.c.l.b16 %v744
    %v777 = vunpack.c.l.b16 %v745
    %v778 = vunpack.c.l.b16 %v746
    %v779 = vunpack.c.l.b16 %v747
    %v780 = vunpack.c.l.b16 %v748
    %v781 = vunpack.c.l.b16 %v749
    %v782 = vunpack.c.l.b16 %v750
    %v783 = vunpack.c.l.b16 %v751
    %v784 = vunpack.c.l.b16 %v752
    %v785 = vunpack.c.l.b16 %v753
    %v786 = vunpack.c.l.b16 %v754
    %v787 = vpack.c.b16 %v772, %v771
    %v788 = vpack.c.b16 %v774, %v773
    %v789 = vpack.c.b16 %v776, %v775
    %v790 = vpack.c.b16 %v778, %v777
    %v791 = vpack.c.b16 %v780, %v779
    %v792 = vpack.c.b16 %v782, %v781
    %v793 = vpack.c.b16 %v784, %v783
    %v794 = vpack.c.b16 %v786, %v785
    %803 = vmatprep.subr.bf16.mxu0 0
    %804 = vmatpush1.bf16.msra.mxu0 %v787
    %805 = vmatprep.subr.bf16.mxu0 0
    %806 = vmatpush1.bf16.msra.mxu0 %v788
    %807 = vmatprep.subr.bf16.mxu0 0
    %808 = vmatpush1.bf16.msra.mxu0 %v789
    %809 = vmatprep.subr.bf16.mxu0 0
    %810 = vmatpush1.bf16.msra.mxu0 %v790
    %811 = vmatprep.subr.bf16.mxu0 0
    %812 = vmatpush1.bf16.msra.mxu0 %v791
    %813 = vmatprep.subr.bf16.mxu0 0
    %814 = vmatpush1.bf16.msra.mxu0 %v792
    %815 = vmatprep.subr.bf16.mxu0 0
    %816 = vmatpush1.bf16.msra.mxu0 %v793
    %817 = vmatprep.subr.bf16.mxu0 0
    %818 = vmatpush1.bf16.msra.mxu0 %v794
    %819 = vmatprep.subr.bf16.mxu0 0
    %820 = vmatpush1.bf16.msra.mxu0 0
    %821 = vmatprep.subr.bf16.mxu0 0
    %822 = vmatpush1.bf16.msra.mxu0 0
    %823 = vmatprep.subr.bf16.mxu0 0
    %824 = vmatpush1.bf16.msra.mxu0 0
    %825 = vmatprep.subr.bf16.mxu0 0
    %826 = vmatpush1.bf16.msra.mxu0 0
    %827 = vmatprep.subr.bf16.mxu0 0
    %828 = vmatpush1.bf16.msra.mxu0 0
    %829 = vmatprep.subr.bf16.mxu0 0
    %830 = vmatpush1.bf16.msra.mxu0 0
    %831 = vmatprep.subr.bf16.mxu0 0
    %832 = vmatpush1.bf16.msra.mxu0 0
    %833 = vmatprep.subr.bf16.mxu0 0
    %834 = vmatpush1.bf16.msra.mxu0 0
    %835 = vmatprep.mubr.bf16.mxu0 0
    %836 = vmatmul.mubr.bf16.gmra.mrb[0].mxu0 %v717
    %v837 = vpop.f32.mrb[0].mxu0
    %v838 = vadd.f32 0.0, %v837
    %v839 = vpop.f32.mrb[0].mxu0
    %v840 = vpop.f32.mrb[0].mxu0
    %v841 = vadd.f32 0.0, %v840
    %v842 = vpop.f32.mrb[0].mxu0
    %843 = vmatprep.mubr.bf16.mxu0 0
    %844 = vmatmul.mubr.bf16.gmra.mrb[0].mxu0 %v718
    %v845 = vpop.f32.mrb[0].mxu0
    %v846 = vadd.f32 0.0, %v845
    %v847 = vpop.f32.mrb[0].mxu0
    %v848 = vpop.f32.mrb[0].mxu0
    %v849 = vadd.f32 0.0, %v848
    %v850 = vpop.f32.mrb[0].mxu0
    %851 = vmatprep.mubr.bf16.mxu0 0
    %852 = vmatmul.mubr.bf16.gmra.mrb[0].mxu0 %v719
    %v853 = vpop.f32.mrb[0].mxu0
    %v854 = vadd.f32 0.0, %v853
    %v855 = vpop.f32.mrb[0].mxu0
    %v856 = vpop.f32.mrb[0].mxu0
    %v857 = vadd.f32 0.0, %v856
    %v858 = vpop.f32.mrb[0].mxu0
    %859 = vmatprep.mubr.bf16.mxu0 0
    %860 = vmatmul.mubr.bf16.gmra.mrb[0].mxu0 %v720
    %v861 = vpop.f32.mrb[0].mxu0
    %v862 = vadd.f32 0.0, %v861
    %v863 = vpop.f32.mrb[0].mxu0
    %v864 = vpop.f32.mrb[0].mxu0
    %v865 = vadd.f32 0.0, %v864
    %v866 = vpop.f32.mrb[0].mxu0
    %867 = vdwg.mxu0
    %v884 = vunpack.c.l.b16 %v722
    %v885 = vunpack.c.l.b16 %v723
    %v886 = vunpack.c.l.b16 %v724
    %v887 = vunpack.c.l.b16 %v725
    %v888 = vunpack.c.l.b16 %v726
    %v889 = vunpack.c.l.b16 %v727
    %v890 = vunpack.c.l.b16 %v728
    %v891 = vunpack.c.l.b16 %v729
    %v892 = vunpack.c.l.b16 %v730
    %v893 = vunpack.c.l.b16 %v731
    %v894 = vunpack.c.l.b16 %v732
    %v895 = vunpack.c.l.b16 %v733
    %v896 = vunpack.c.l.b16 %v734
    %v897 = vunpack.c.l.b16 %v735
    %v898 = vunpack.c.l.b16 %v736
    %v899 = vunpack.c.l.b16 %v737
    %v900 = vpack.c.b16 %v885, %v884
    %v901 = vpack.c.b16 %v887, %v886
    %v902 = vpack.c.b16 %v889, %v888
    %v903 = vpack.c.b16 %v891, %v890
    %v904 = vpack.c.b16 %v893, %v892
    %v905 = vpack.c.b16 %v895, %v894
    %v906 = vpack.c.b16 %v897, %v896
    %v907 = vpack.c.b16 %v899, %v898
    %916 = vmatprep.subr.bf16.mxu0 0
    %917 = vmatpush1.bf16.msra.mxu0 %v900
    %918 = vmatprep.subr.bf16.mxu0 0
    %919 = vmatpush1.bf16.msra.mxu0 %v901
    %920 = vmatprep.subr.bf16.mxu0 0
    %921 = vmatpush1.bf16.msra.mxu0 %v902
    %922 = vmatprep.subr.bf16.mxu0 0
    %923 = vmatpush1.bf16.msra.mxu0 %v903
    %924 = vmatprep.subr.bf16.mxu0 0
    %925 = vmatpush1.bf16.msra.mxu0 %v904
    %926 = vmatprep.subr.bf16.mxu0 0
    %927 = vmatpush1.bf16.msra.mxu0 %v905
    %928 = vmatprep.subr.bf16.mxu0 0
    %929 = vmatpush1.bf16.msra.mxu0 %v906
    %930 = vmatprep.subr.bf16.mxu0 0
    %931 = vmatpush1.bf16.msra.mxu0 %v907
    %932 = vmatprep.subr.bf16.mxu0 0
    %933 = vmatpush1.bf16.msra.mxu0 0
    %934 = vmatprep.subr.bf16.mxu0 0
    %935 = vmatpush1.bf16.msra.mxu0 0
    %936 = vmatprep.subr.bf16.mxu0 0
    %937 = vmatpush1.bf16.msra.mxu0 0
    %938 = vmatprep.subr.bf16.mxu0 0
    %939 = vmatpush1.bf16.msra.mxu0 0
    %940 = vmatprep.subr.bf16.mxu0 0
    %941 = vmatpush1.bf16.msra.mxu0 0
    %942 = vmatprep.subr.bf16.mxu0 0
    %943 = vmatpush1.bf16.msra.mxu0 0
    %944 = vmatprep.subr.bf16.mxu0 0
    %945 = vmatpush1.bf16.msra.mxu0 0
    %946 = vmatprep.subr.bf16.mxu0 0
    %947 = vmatpush1.bf16.msra.mxu0 0
    %948 = vmatprep.mubr.bf16.mxu0 0
    %949 = vmatmul.mubr.bf16.gmra.mrb[0].mxu0 %v648
    %v950 = vpop.f32.mrb[0].mxu0
    %v951 = vadd.f32 %v838, %v950
    %v952 = vpop.f32.mrb[0].mxu0
    %v953 = vpop.f32.mrb[0].mxu0
    %v954 = vadd.f32 %v841, %v953
    %v955 = vpop.f32.mrb[0].mxu0
    %956 = vmatprep.mubr.bf16.mxu0 0
    %957 = vmatmul.mubr.bf16.gmra.mrb[0].mxu0 %v649
    %v958 = vpop.f32.mrb[0].mxu0
    %v959 = vadd.f32 %v846, %v958
    %v960 = vpop.f32.mrb[0].mxu0
    %v961 = vpop.f32.mrb[0].mxu0
    %v962 = vadd.f32 %v849, %v961
    %v963 = vpop.f32.mrb[0].mxu0
    %964 = vmatprep.mubr.bf16.mxu0 0
    %965 = vmatmul.mubr.bf16.gmra.mrb[0].mxu0 %v650
    %v966 = vpop.f32.mrb[0].mxu0
    %v967 = vadd.f32 %v854, %v966
    %v968 = vpop.f32.mrb[0].mxu0
    %v969 = vpop.f32.mrb[0].mxu0
    %v970 = vadd.f32 %v857, %v969
    %v971 = vpop.f32.mrb[0].mxu0
    %972 = vmatprep.mubr.bf16.mxu0 0
    %973 = vmatmul.mubr.bf16.gmra.mrb[0].mxu0 %v651
    %v974 = vpop.f32.mrb[0].mxu0
    %v975 = vadd.f32 %v862, %v974
    %v976 = vpop.f32.mrb[0].mxu0
    %v977 = vpop.f32.mrb[0].mxu0
    %v978 = vadd.f32 %v865, %v977
    %v979 = vpop.f32.mrb[0].mxu0
    %980 = vdwg.mxu0
    %s981 = scalar_lea.vmem %s4, 1
    %v982 = vld [vmem:[%s981] sm:$0x1]
    %v984 = vlaneseq
    %v985 = vshrl.u32 %v984, 7
    %v986 = vsub.s32 0, %v985
    %v987 = vrot.slane %v982, %v986
    %v989 = vadd.f32 %v951, %v987
    %v990 = vadd.f32 %v954, %v987
    %v991 = vadd.f32 %v959, %v987
    %v992 = vadd.f32 %v962, %v987
    %v993 = vadd.f32 %v967, %v987
    %v994 = vadd.f32 %v970, %v987
    %v995 = vadd.f32 %v975, %v987
    %v996 = vadd.f32 %v978, %v987
    %v997 = vmul.f32 %v989, %v989
    %v998 = vmul.f32 %v990, %v990
    %v999 = vmul.f32 %v991, %v991
    %v1000 = vmul.f32 %v992, %v992
    %v1001 = vmul.f32 %v993, %v993
    %v1002 = vmul.f32 %v994, %v994
    %v1003 = vmul.f32 %v995, %v995
    %v1004 = vmul.f32 %v996, %v996
    %1005 = vadd.xlane.f32.xlu0 %v997
    %v1006 = vpop.xlane.xlu0 %1005
    %1007 = vadd.xlane.f32.xlu0 %v998
    %v1008 = vpop.xlane.xlu0 %1007
    %1009 = vadd.xlane.f32.xlu0 %v999
    %v1010 = vpop.xlane.xlu0 %1009
    %1011 = vadd.xlane.f32.xlu0 %v1000
    %v1012 = vpop.xlane.xlu0 %1011
    %1013 = vadd.xlane.f32.xlu0 %v1001
    %v1014 = vpop.xlane.xlu0 %1013
    %1015 = vadd.xlane.f32.xlu0 %v1002
    %v1016 = vpop.xlane.xlu0 %1015
    %1017 = vadd.xlane.f32.xlu0 %v1003
    %v1018 = vpop.xlane.xlu0 %1017
    %1019 = vadd.xlane.f32.xlu0 %v1004
    %v1020 = vpop.xlane.xlu0 %1019
    %v1021 = vmax.f32 %v1006, 1e-24
    %v1022 = vmax.f32 %v1008, 1e-24
    %v1023 = vmax.f32 %v1010, 1e-24
    %v1024 = vmax.f32 %v1012, 1e-24
    %v1025 = vmax.f32 %v1014, 1e-24
    %v1026 = vmax.f32 %v1016, 1e-24
    %v1027 = vmax.f32 %v1018, 1e-24
    %v1028 = vmax.f32 %v1020, 1e-24
    %v1029 = vrsqrt.pop %v1021
    %v1030 = vrsqrt.pop %v1022
    %v1031 = vrsqrt.pop %v1023
    %v1032 = vrsqrt.pop %v1024
    %v1033 = vrsqrt.pop %v1025
    %v1034 = vrsqrt.pop %v1026
    %v1035 = vrsqrt.pop %v1027
    %v1036 = vrsqrt.pop %v1028
    %v1037 = vmul.f32 %v989, %v1029
    %v1038 = vmul.f32 %v990, %v1030
    %v1039 = vmul.f32 %v991, %v1031
    %v1040 = vmul.f32 %v992, %v1032
    %v1041 = vmul.f32 %v993, %v1033
    %v1042 = vmul.f32 %v994, %v1034
    %v1043 = vmul.f32 %v995, %v1035
    %v1044 = vmul.f32 %v996, %v1036
    %v1045 = vmax.f32 %v1037, 0.0
    %v1046 = vmax.f32 %v1038, 0.0
    %v1047 = vmax.f32 %v1039, 0.0
    %v1048 = vmax.f32 %v1040, 0.0
    %v1049 = vmax.f32 %v1041, 0.0
    %v1050 = vmax.f32 %v1042, 0.0
    %v1051 = vmax.f32 %v1043, 0.0
    %v1052 = vmax.f32 %v1044, 0.0
    %1053 = vadd.xlane.f32.xlu0 %v1045
    %v1054 = vpop.xlane.xlu0 %1053
    %1055 = vadd.xlane.f32.xlu0 %v1046
    %v1056 = vpop.xlane.xlu0 %1055
    %1057 = vadd.xlane.f32.xlu0 %v1047
    %v1058 = vpop.xlane.xlu0 %1057
    %1059 = vadd.xlane.f32.xlu0 %v1048
    %v1060 = vpop.xlane.xlu0 %1059
    %1061 = vadd.xlane.f32.xlu0 %v1049
    %v1062 = vpop.xlane.xlu0 %1061
    %1063 = vadd.xlane.f32.xlu0 %v1050
    %v1064 = vpop.xlane.xlu0 %1063
    %1065 = vadd.xlane.f32.xlu0 %v1051
    %v1066 = vpop.xlane.xlu0 %1065
    %1067 = vadd.xlane.f32.xlu0 %v1052
    %v1068 = vpop.xlane.xlu0 %1067
    %v1069 = vmul.f32 %v1054, 0.03125
    %v1070 = vmul.f32 %v1056, 0.03125
    %v1071 = vmul.f32 %v1058, 0.03125
    %v1072 = vmul.f32 %v1060, 0.03125
    %v1073 = vmul.f32 %v1062, 0.03125
    %v1074 = vmul.f32 %v1064, 0.03125
    %v1075 = vmul.f32 %v1066, 0.03125
    %v1076 = vmul.f32 %v1068, 0.03125
    %v1077 = vmul.f32 %v1045, %v1045
    %v1078 = vmul.f32 %v1046, %v1046
    %v1079 = vmul.f32 %v1047, %v1047
    %v1080 = vmul.f32 %v1048, %v1048
    %v1081 = vmul.f32 %v1049, %v1049
    %v1082 = vmul.f32 %v1050, %v1050
    %v1083 = vmul.f32 %v1051, %v1051
    %v1084 = vmul.f32 %v1052, %v1052
    %1085 = vadd.xlane.f32.xlu0 %v1077
    %v1086 = vpop.xlane.xlu0 %1085
    %1087 = vadd.xlane.f32.xlu0 %v1078
    %v1088 = vpop.xlane.xlu0 %1087
    %1089 = vadd.xlane.f32.xlu0 %v1079
    %v1090 = vpop.xlane.xlu0 %1089
    %1091 = vadd.xlane.f32.xlu0 %v1080
    %v1092 = vpop.xlane.xlu0 %1091
    %1093 = vadd.xlane.f32.xlu0 %v1081
    %v1094 = vpop.xlane.xlu0 %1093
    %1095 = vadd.xlane.f32.xlu0 %v1082
    %v1096 = vpop.xlane.xlu0 %1095
    %1097 = vadd.xlane.f32.xlu0 %v1083
    %v1098 = vpop.xlane.xlu0 %1097
    %1099 = vadd.xlane.f32.xlu0 %v1084
    %v1100 = vpop.xlane.xlu0 %1099
    %v1101 = vmul.f32 %v1086, 0.03125
    %v1102 = vmul.f32 %v1088, 0.03125
    %v1103 = vmul.f32 %v1090, 0.03125
    %v1104 = vmul.f32 %v1092, 0.03125
    %v1105 = vmul.f32 %v1094, 0.03125
    %v1106 = vmul.f32 %v1096, 0.03125
    %v1107 = vmul.f32 %v1098, 0.03125
    %v1108 = vmul.f32 %v1100, 0.03125
    %v1109 = vmul.f32 %v1069, %v1069
    %v1110 = vmul.f32 %v1070, %v1070
    %v1111 = vmul.f32 %v1071, %v1071
    %v1112 = vmul.f32 %v1072, %v1072
    %v1113 = vmul.f32 %v1073, %v1073
    %v1114 = vmul.f32 %v1074, %v1074
    %v1115 = vmul.f32 %v1075, %v1075
    %v1116 = vmul.f32 %v1076, %v1076
    %v1117 = vsub.f32 %v1101, %v1109
    %v1118 = vsub.f32 %v1102, %v1110
    %v1119 = vsub.f32 %v1103, %v1111
    %v1120 = vsub.f32 %v1104, %v1112
    %v1121 = vsub.f32 %v1105, %v1113
    %v1122 = vsub.f32 %v1106, %v1114
    %v1123 = vsub.f32 %v1107, %v1115
    %v1124 = vsub.f32 %v1108, %v1116
    %v1125 = vsub.f32 %v1045, %v1069
    %v1126 = vsub.f32 %v1046, %v1070
    %v1127 = vsub.f32 %v1047, %v1071
    %v1128 = vsub.f32 %v1048, %v1072
    %v1129 = vsub.f32 %v1049, %v1073
    %v1130 = vsub.f32 %v1050, %v1074
    %v1131 = vsub.f32 %v1051, %v1075
    %v1132 = vsub.f32 %v1052, %v1076
    %v1133 = vadd.f32 %v1117, 1e-05
    %v1134 = vadd.f32 %v1118, 1e-05
    %v1135 = vadd.f32 %v1119, 1e-05
    %v1136 = vadd.f32 %v1120, 1e-05
    %v1137 = vadd.f32 %v1121, 1e-05
    %v1138 = vadd.f32 %v1122, 1e-05
    %v1139 = vadd.f32 %v1123, 1e-05
    %v1140 = vadd.f32 %v1124, 1e-05
    %v1141 = vrsqrt.pop %v1133
    %v1142 = vrsqrt.pop %v1134
    %v1143 = vrsqrt.pop %v1135
    %v1144 = vrsqrt.pop %v1136
    %v1145 = vrsqrt.pop %v1137
    %v1146 = vrsqrt.pop %v1138
    %v1147 = vrsqrt.pop %v1139
    %v1148 = vrsqrt.pop %v1140
    %v1149 = vmul.f32 %v1125, %v1141
    %v1150 = vmul.f32 %v1126, %v1142
    %v1151 = vmul.f32 %v1127, %v1143
    %v1152 = vmul.f32 %v1128, %v1144
    %v1153 = vmul.f32 %v1129, %v1145
    %v1154 = vmul.f32 %v1130, %v1146
    %v1155 = vmul.f32 %v1131, %v1147
    %v1156 = vmul.f32 %v1132, %v1148
    %v1157 = vsel %vm639, %v1149, 0.0
    %v1158 = vsel %vm639, %v1150, 0.0
    %v1159 = vsel %vm639, %v1151, 0.0
    %v1160 = vsel %vm639, %v1152, 0.0
    %v1161 = vsel %vm639, %v1153, 0.0
    %v1162 = vsel %vm639, %v1154, 0.0
    %v1163 = vsel %vm639, %v1155, 0.0
    %v1164 = vsel %vm639, %v1156, 0.0
    %v1165 = vpack.c.bf16 %v1158, %v1157
    %v1166 = vpack.c.bf16 %v1160, %v1159
    %v1167 = vpack.c.bf16 %v1162, %v1161
    %v1168 = vpack.c.bf16 %v1164, %v1163
    %1169 = vmatprep.subr.bf16.mxu0 0
    %1170 = vmatpush1.bf16.msra.mxu0 %v1165
    %1171 = vmatprep.subr.bf16.mxu0 0
    %1172 = vmatpush1.bf16.msra.mxu0 %v1166
    %1173 = vmatprep.subr.bf16.mxu0 0
    %1174 = vmatpush1.bf16.msra.mxu0 %v1167
    %1175 = vmatprep.subr.bf16.mxu0 0
    %1176 = vmatpush1.bf16.msra.mxu0 %v1168
    %1177 = vmatprep.subr.bf16.mxu0 0
    %1178 = vmatpush1.bf16.msra.mxu0 0
    %1179 = vmatprep.subr.bf16.mxu0 0
    %1180 = vmatpush1.bf16.msra.mxu0 0
    %1181 = vmatprep.subr.bf16.mxu0 0
    %1182 = vmatpush1.bf16.msra.mxu0 0
    %1183 = vmatprep.subr.bf16.mxu0 0
    %1184 = vmatpush1.bf16.msra.mxu0 0
    %1185 = vmatprep.subr.bf16.mxu0 0
    %1186 = vmatpush1.bf16.msra.mxu0 0
    %1187 = vmatprep.subr.bf16.mxu0 0
    %1188 = vmatpush1.bf16.msra.mxu0 0
    %1189 = vmatprep.subr.bf16.mxu0 0
    %1190 = vmatpush1.bf16.msra.mxu0 0
    %1191 = vmatprep.subr.bf16.mxu0 0
    %1192 = vmatpush1.bf16.msra.mxu0 0
    %1193 = vmatprep.subr.bf16.mxu0 0
    %1194 = vmatpush1.bf16.msra.mxu0 0
    %1195 = vmatprep.subr.bf16.mxu0 0
    %1196 = vmatpush1.bf16.msra.mxu0 0
    %1197 = vmatprep.subr.bf16.mxu0 0
    %1198 = vmatpush1.bf16.msra.mxu0 0
    %1199 = vmatprep.subr.bf16.mxu0 0
    %1200 = vmatpush1.bf16.msra.mxu0 0
    %1201 = vmatprep.mubr.bf16.mxu0 0
    %1202 = vmatmul.mubr.bf16.gmra.mrb[0].mxu0 %v124
    %v1203 = vpop.f32.mrb[0].mxu0
    %v1204 = vadd.f32 0.0, %v1203
    %v1205 = vpop.f32.mrb[0].mxu0
    %v1206 = vpop.f32.mrb[0].mxu0
    %v1207 = vadd.f32 0.0, %v1206
    %v1208 = vpop.f32.mrb[0].mxu0
    %1209 = vmatprep.mubr.bf16.mxu0 0
    %1210 = vmatmul.mubr.bf16.gmra.mrb[0].mxu0 %v127
    %v1211 = vpop.f32.mrb[0].mxu0
    %v1212 = vadd.f32 0.0, %v1211
    %v1213 = vpop.f32.mrb[0].mxu0
    %v1214 = vpop.f32.mrb[0].mxu0
    %v1215 = vadd.f32 0.0, %v1214
    %v1216 = vpop.f32.mrb[0].mxu0
    %1217 = vmatprep.mubr.bf16.mxu0 0
    %1218 = vmatmul.mubr.bf16.gmra.mrb[0].mxu0 %v130
    %v1219 = vpop.f32.mrb[0].mxu0
    %v1220 = vadd.f32 0.0, %v1219
    %v1221 = vpop.f32.mrb[0].mxu0
    %v1222 = vpop.f32.mrb[0].mxu0
    %v1223 = vadd.f32 0.0, %v1222
    %v1224 = vpop.f32.mrb[0].mxu0
    %1225 = vmatprep.mubr.bf16.mxu0 0
    %1226 = vmatmul.mubr.bf16.gmra.mrb[0].mxu0 %v133
    %v1227 = vpop.f32.mrb[0].mxu0
    %v1228 = vadd.f32 0.0, %v1227
    %v1229 = vpop.f32.mrb[0].mxu0
    %v1230 = vpop.f32.mrb[0].mxu0
    %v1231 = vadd.f32 0.0, %v1230
    %v1232 = vpop.f32.mrb[0].mxu0
    %1233 = vdwg.mxu0
    %v1234 = vpack.c.bf16 %v1207, %v1204
    %v1235 = vpack.c.bf16 %v1215, %v1212
    %v1236 = vpack.c.bf16 %v1223, %v1220
    %v1237 = vpack.c.bf16 %v1231, %v1228
    %s1238 = scalar_lea.vmem [#allocation6], 128
    %v1239 = vld [vmem:[%s1238] sm:$0xf]
    %v1240 = vld [vmem:[%s1238 + $0x4] sm:$0xf]
    %v1241 = vld [vmem:[%s1238 + $0x8] sm:$0xf]
    %v1242 = vld [vmem:[%s1238 + $0xc] sm:$0xf]
    %v1243 = vld [vmem:[%s1238 + $0x10] sm:$0xf]
    %v1244 = vld [vmem:[%s1238 + $0x14] sm:$0xf]
    %v1245 = vld [vmem:[%s1238 + $0x18] sm:$0xf]
    %v1246 = vld [vmem:[%s1238 + $0x1c] sm:$0xf]
    %v1247 = vld [vmem:[%s1238 + $0x20] sm:$0xf]
    %v1248 = vld [vmem:[%s1238 + $0x24] sm:$0xf]
    %v1249 = vld [vmem:[%s1238 + $0x28] sm:$0xf]
    %v1250 = vld [vmem:[%s1238 + $0x2c] sm:$0xf]
    %v1251 = vld [vmem:[%s1238 + $0x30] sm:$0xf]
    %v1252 = vld [vmem:[%s1238 + $0x34] sm:$0xf]
    %v1253 = vld [vmem:[%s1238 + $0x38] sm:$0xf]
    %v1254 = vld [vmem:[%s1238 + $0x3c] sm:$0xf]
    %s1255 = scalar_lea.vmem [#allocation7], 128
    %v1256 = vld [vmem:[%s1255] sm:$0xf]
    %v1257 = vld [vmem:[%s1255 + $0x4] sm:$0xf]
    %v1258 = vld [vmem:[%s1255 + $0x8] sm:$0xf]
    %v1259 = vld [vmem:[%s1255 + $0xc] sm:$0xf]
    %v1260 = vld [vmem:[%s1255 + $0x10] sm:$0xf]
    %v1261 = vld [vmem:[%s1255 + $0x14] sm:$0xf]
    %v1262 = vld [vmem:[%s1255 + $0x18] sm:$0xf]
    %v1263 = vld [vmem:[%s1255 + $0x1c] sm:$0xf]
    %v1264 = vld [vmem:[%s1255 + $0x20] sm:$0xf]
    %v1265 = vld [vmem:[%s1255 + $0x24] sm:$0xf]
    %v1266 = vld [vmem:[%s1255 + $0x28] sm:$0xf]
    %v1267 = vld [vmem:[%s1255 + $0x2c] sm:$0xf]
    %v1268 = vld [vmem:[%s1255 + $0x30] sm:$0xf]
    %v1269 = vld [vmem:[%s1255 + $0x34] sm:$0xf]
    %v1270 = vld [vmem:[%s1255 + $0x38] sm:$0xf]
    %v1271 = vld [vmem:[%s1255 + $0x3c] sm:$0xf]
    %v1288 = vunpack.c.l.b16 %v1256
    %v1289 = vunpack.c.l.b16 %v1257
    %v1290 = vunpack.c.l.b16 %v1258
    %v1291 = vunpack.c.l.b16 %v1259
    %v1292 = vunpack.c.l.b16 %v1260
    %v1293 = vunpack.c.l.b16 %v1261
    %v1294 = vunpack.c.l.b16 %v1262
    %v1295 = vunpack.c.l.b16 %v1263
    %v1296 = vunpack.c.l.b16 %v1264
    %v1297 = vunpack.c.l.b16 %v1265
    %v1298 = vunpack.c.l.b16 %v1266
    %v1299 = vunpack.c.l.b16 %v1267
    %v1300 = vunpack.c.l.b16 %v1268
    %v1301 = vunpack.c.l.b16 %v1269
    %v1302 = vunpack.c.l.b16 %v1270
    %v1303 = vunpack.c.l.b16 %v1271
    %v1304 = vpack.c.b16 %v1289, %v1288
    %v1305 = vpack.c.b16 %v1291, %v1290
    %v1306 = vpack.c.b16 %v1293, %v1292
    %v1307 = vpack.c.b16 %v1295, %v1294
    %v1308 = vpack.c.b16 %v1297, %v1296
    %v1309 = vpack.c.b16 %v1299, %v1298
    %v1310 = vpack.c.b16 %v1301, %v1300
    %v1311 = vpack.c.b16 %v1303, %v1302
    %1320 = vmatprep.subr.bf16.mxu0 0
    %1321 = vmatpush1.bf16.msra.mxu0 %v1304
    %1322 = vmatprep.subr.bf16.mxu0 0
    %1323 = vmatpush1.bf16.msra.mxu0 %v1305
    %1324 = vmatprep.subr.bf16.mxu0 0
    %1325 = vmatpush1.bf16.msra.mxu0 %v1306
    %1326 = vmatprep.subr.bf16.mxu0 0
    %1327 = vmatpush1.bf16.msra.mxu0 %v1307
    %1328 = vmatprep.subr.bf16.mxu0 0
    %1329 = vmatpush1.bf16.msra.mxu0 %v1308
    %1330 = vmatprep.subr.bf16.mxu0 0
    %1331 = vmatpush1.bf16.msra.mxu0 %v1309
    %1332 = vmatprep.subr.bf16.mxu0 0
    %1333 = vmatpush1.bf16.msra.mxu0 %v1310
    %1334 = vmatprep.subr.bf16.mxu0 0
    %1335 = vmatpush1.bf16.msra.mxu0 %v1311
    %1336 = vmatprep.subr.bf16.mxu0 0
    %1337 = vmatpush1.bf16.msra.mxu0 0
    %1338 = vmatprep.subr.bf16.mxu0 0
    %1339 = vmatpush1.bf16.msra.mxu0 0
    %1340 = vmatprep.subr.bf16.mxu0 0
    %1341 = vmatpush1.bf16.msra.mxu0 0
    %1342 = vmatprep.subr.bf16.mxu0 0
    %1343 = vmatpush1.bf16.msra.mxu0 0
    %1344 = vmatprep.subr.bf16.mxu0 0
    %1345 = vmatpush1.bf16.msra.mxu0 0
    %1346 = vmatprep.subr.bf16.mxu0 0
    %1347 = vmatpush1.bf16.msra.mxu0 0
    %1348 = vmatprep.subr.bf16.mxu0 0
    %1349 = vmatpush1.bf16.msra.mxu0 0
    %1350 = vmatprep.subr.bf16.mxu0 0
    %1351 = vmatpush1.bf16.msra.mxu0 0
    %1352 = vmatprep.mubr.bf16.mxu0 0
    %1353 = vmatmul.mubr.bf16.gmra.mrb[0].mxu0 %v1234
    %v1354 = vpop.f32.mrb[0].mxu0
    %v1355 = vadd.f32 0.0, %v1354
    %v1356 = vpop.f32.mrb[0].mxu0
    %v1357 = vpop.f32.mrb[0].mxu0
    %v1358 = vadd.f32 0.0, %v1357
    %v1359 = vpop.f32.mrb[0].mxu0
    %1360 = vmatprep.mubr.bf16.mxu0 0
    %1361 = vmatmul.mubr.bf16.gmra.mrb[0].mxu0 %v1235
    %v1362 = vpop.f32.mrb[0].mxu0
    %v1363 = vadd.f32 0.0, %v1362
    %v1364 = vpop.f32.mrb[0].mxu0
    %v1365 = vpop.f32.mrb[0].mxu0
    %v1366 = vadd.f32 0.0, %v1365
    %v1367 = vpop.f32.mrb[0].mxu0
    %1368 = vmatprep.mubr.bf16.mxu0 0
    %1369 = vmatmul.mubr.bf16.gmra.mrb[0].mxu0 %v1236
    %v1370 = vpop.f32.mrb[0].mxu0
    %v1371 = vadd.f32 0.0, %v1370
    %v1372 = vpop.f32.mrb[0].mxu0
    %v1373 = vpop.f32.mrb[0].mxu0
    %v1374 = vadd.f32 0.0, %v1373
    %v1375 = vpop.f32.mrb[0].mxu0
    %1376 = vmatprep.mubr.bf16.mxu0 0
    %1377 = vmatmul.mubr.bf16.gmra.mrb[0].mxu0 %v1237
    %v1378 = vpop.f32.mrb[0].mxu0
    %v1379 = vadd.f32 0.0, %v1378
    %v1380 = vpop.f32.mrb[0].mxu0
    %v1381 = vpop.f32.mrb[0].mxu0
    %v1382 = vadd.f32 0.0, %v1381
    %v1383 = vpop.f32.mrb[0].mxu0
    %1384 = vdwg.mxu0
    %v1401 = vunpack.c.l.b16 %v1239
    %v1402 = vunpack.c.l.b16 %v1240
    %v1403 = vunpack.c.l.b16 %v1241
    %v1404 = vunpack.c.l.b16 %v1242
    %v1405 = vunpack.c.l.b16 %v1243
    %v1406 = vunpack.c.l.b16 %v1244
    %v1407 = vunpack.c.l.b16 %v1245
    %v1408 = vunpack.c.l.b16 %v1246
    %v1409 = vunpack.c.l.b16 %v1247
    %v1410 = vunpack.c.l.b16 %v1248
    %v1411 = vunpack.c.l.b16 %v1249
    %v1412 = vunpack.c.l.b16 %v1250
    %v1413 = vunpack.c.l.b16 %v1251
    %v1414 = vunpack.c.l.b16 %v1252
    %v1415 = vunpack.c.l.b16 %v1253
    %v1416 = vunpack.c.l.b16 %v1254
    %v1417 = vpack.c.b16 %v1402, %v1401
    %v1418 = vpack.c.b16 %v1404, %v1403
    %v1419 = vpack.c.b16 %v1406, %v1405
    %v1420 = vpack.c.b16 %v1408, %v1407
    %v1421 = vpack.c.b16 %v1410, %v1409
    %v1422 = vpack.c.b16 %v1412, %v1411
    %v1423 = vpack.c.b16 %v1414, %v1413
    %v1424 = vpack.c.b16 %v1416, %v1415
    %1433 = vmatprep.subr.bf16.mxu0 0
    %1434 = vmatpush1.bf16.msra.mxu0 %v1417
    %1435 = vmatprep.subr.bf16.mxu0 0
    %1436 = vmatpush1.bf16.msra.mxu0 %v1418
    %1437 = vmatprep.subr.bf16.mxu0 0
    %1438 = vmatpush1.bf16.msra.mxu0 %v1419
    %1439 = vmatprep.subr.bf16.mxu0 0
    %1440 = vmatpush1.bf16.msra.mxu0 %v1420
    %1441 = vmatprep.subr.bf16.mxu0 0
    %1442 = vmatpush1.bf16.msra.mxu0 %v1421
    %1443 = vmatprep.subr.bf16.mxu0 0
    %1444 = vmatpush1.bf16.msra.mxu0 %v1422
    %1445 = vmatprep.subr.bf16.mxu0 0
    %1446 = vmatpush1.bf16.msra.mxu0 %v1423
    %1447 = vmatprep.subr.bf16.mxu0 0
    %1448 = vmatpush1.bf16.msra.mxu0 %v1424
    %1449 = vmatprep.subr.bf16.mxu0 0
    %1450 = vmatpush1.bf16.msra.mxu0 0
    %1451 = vmatprep.subr.bf16.mxu0 0
    %1452 = vmatpush1.bf16.msra.mxu0 0
    %1453 = vmatprep.subr.bf16.mxu0 0
    %1454 = vmatpush1.bf16.msra.mxu0 0
    %1455 = vmatprep.subr.bf16.mxu0 0
    %1456 = vmatpush1.bf16.msra.mxu0 0
    %1457 = vmatprep.subr.bf16.mxu0 0
    %1458 = vmatpush1.bf16.msra.mxu0 0
    %1459 = vmatprep.subr.bf16.mxu0 0
    %1460 = vmatpush1.bf16.msra.mxu0 0
    %1461 = vmatprep.subr.bf16.mxu0 0
    %1462 = vmatpush1.bf16.msra.mxu0 0
    %1463 = vmatprep.subr.bf16.mxu0 0
    %1464 = vmatpush1.bf16.msra.mxu0 0
    %1465 = vmatprep.mubr.bf16.mxu0 0
    %1466 = vmatmul.mubr.bf16.gmra.mrb[0].mxu0 %v1165
    %v1467 = vpop.f32.mrb[0].mxu0
    %v1468 = vadd.f32 %v1355, %v1467
    %v1469 = vpop.f32.mrb[0].mxu0
    %v1470 = vpop.f32.mrb[0].mxu0
    %v1471 = vadd.f32 %v1358, %v1470
    %v1472 = vpop.f32.mrb[0].mxu0
    %1473 = vmatprep.mubr.bf16.mxu0 0
    %1474 = vmatmul.mubr.bf16.gmra.mrb[0].mxu0 %v1166
    %v1475 = vpop.f32.mrb[0].mxu0
    %v1476 = vadd.f32 %v1363, %v1475
    %v1477 = vpop.f32.mrb[0].mxu0
    %v1478 = vpop.f32.mrb[0].mxu0
    %v1479 = vadd.f32 %v1366, %v1478
    %v1480 = vpop.f32.mrb[0].mxu0
    %1481 = vmatprep.mubr.bf16.mxu0 0
    %1482 = vmatmul.mubr.bf16.gmra.mrb[0].mxu0 %v1167
    %v1483 = vpop.f32.mrb[0].mxu0
    %v1484 = vadd.f32 %v1371, %v1483
    %v1485 = vpop.f32.mrb[0].mxu0
    %v1486 = vpop.f32.mrb[0].mxu0
    %v1487 = vadd.f32 %v1374, %v1486
    %v1488 = vpop.f32.mrb[0].mxu0
    %1489 = vmatprep.mubr.bf16.mxu0 0
    %1490 = vmatmul.mubr.bf16.gmra.mrb[0].mxu0 %v1168
    %v1491 = vpop.f32.mrb[0].mxu0
    %v1492 = vadd.f32 %v1379, %v1491
    %v1493 = vpop.f32.mrb[0].mxu0
    %v1494 = vpop.f32.mrb[0].mxu0
    %v1495 = vadd.f32 %v1382, %v1494
    %v1496 = vpop.f32.mrb[0].mxu0
    %1497 = vdwg.mxu0
    %s1498 = scalar_lea.vmem %s4, 2
    %v1499 = vld [vmem:[%s1498] sm:$0x1]
    %v1501 = vlaneseq
    %v1502 = vshrl.u32 %v1501, 7
    %v1503 = vsub.s32 0, %v1502
    %v1504 = vrot.slane %v1499, %v1503
    %v1506 = vadd.f32 %v1468, %v1504
    %v1507 = vadd.f32 %v1471, %v1504
    %v1508 = vadd.f32 %v1476, %v1504
    %v1509 = vadd.f32 %v1479, %v1504
    %v1510 = vadd.f32 %v1484, %v1504
    %v1511 = vadd.f32 %v1487, %v1504
    %v1512 = vadd.f32 %v1492, %v1504
    %v1513 = vadd.f32 %v1495, %v1504
    %v1514 = vmul.f32 %v1506, %v1506
    %v1515 = vmul.f32 %v1507, %v1507
    %v1516 = vmul.f32 %v1508, %v1508
    %v1517 = vmul.f32 %v1509, %v1509
    %v1518 = vmul.f32 %v1510, %v1510
    %v1519 = vmul.f32 %v1511, %v1511
    %v1520 = vmul.f32 %v1512, %v1512
    %v1521 = vmul.f32 %v1513, %v1513
    %1522 = vadd.xlane.f32.xlu0 %v1514
    %v1523 = vpop.xlane.xlu0 %1522
    %1524 = vadd.xlane.f32.xlu0 %v1515
    %v1525 = vpop.xlane.xlu0 %1524
    %1526 = vadd.xlane.f32.xlu0 %v1516
    %v1527 = vpop.xlane.xlu0 %1526
    %1528 = vadd.xlane.f32.xlu0 %v1517
    %v1529 = vpop.xlane.xlu0 %1528
    %1530 = vadd.xlane.f32.xlu0 %v1518
    %v1531 = vpop.xlane.xlu0 %1530
    %1532 = vadd.xlane.f32.xlu0 %v1519
    %v1533 = vpop.xlane.xlu0 %1532
    %1534 = vadd.xlane.f32.xlu0 %v1520
    %v1535 = vpop.xlane.xlu0 %1534
    %1536 = vadd.xlane.f32.xlu0 %v1521
    %v1537 = vpop.xlane.xlu0 %1536
    %v1538 = vmax.f32 %v1523, 1e-24
    %v1539 = vmax.f32 %v1525, 1e-24
    %v1540 = vmax.f32 %v1527, 1e-24
    %v1541 = vmax.f32 %v1529, 1e-24
    %v1542 = vmax.f32 %v1531, 1e-24
    %v1543 = vmax.f32 %v1533, 1e-24
    %v1544 = vmax.f32 %v1535, 1e-24
    %v1545 = vmax.f32 %v1537, 1e-24
    %v1546 = vrsqrt.pop %v1538
    %v1547 = vrsqrt.pop %v1539
    %v1548 = vrsqrt.pop %v1540
    %v1549 = vrsqrt.pop %v1541
    %v1550 = vrsqrt.pop %v1542
    %v1551 = vrsqrt.pop %v1543
    %v1552 = vrsqrt.pop %v1544
    %v1553 = vrsqrt.pop %v1545
    %v1554 = vmul.f32 %v1506, %v1546
    %v1555 = vmul.f32 %v1507, %v1547
    %v1556 = vmul.f32 %v1508, %v1548
    %v1557 = vmul.f32 %v1509, %v1549
    %v1558 = vmul.f32 %v1510, %v1550
    %v1559 = vmul.f32 %v1511, %v1551
    %v1560 = vmul.f32 %v1512, %v1552
    %v1561 = vmul.f32 %v1513, %v1553
    %1562 = vadd.xlane.f32.xlu0 %v1554
    %v1563 = vpop.xlane.xlu0 %1562
    %1564 = vadd.xlane.f32.xlu0 %v1555
    %v1565 = vpop.xlane.xlu0 %1564
    %1566 = vadd.xlane.f32.xlu0 %v1556
    %v1567 = vpop.xlane.xlu0 %1566
    %1568 = vadd.xlane.f32.xlu0 %v1557
    %v1569 = vpop.xlane.xlu0 %1568
    %1570 = vadd.xlane.f32.xlu0 %v1558
    %v1571 = vpop.xlane.xlu0 %1570
    %1572 = vadd.xlane.f32.xlu0 %v1559
    %v1573 = vpop.xlane.xlu0 %1572
    %1574 = vadd.xlane.f32.xlu0 %v1560
    %v1575 = vpop.xlane.xlu0 %1574
    %1576 = vadd.xlane.f32.xlu0 %v1561
    %v1577 = vpop.xlane.xlu0 %1576
    %v1578 = vmul.f32 %v1563, 0.125
    %v1579 = vmul.f32 %v1565, 0.125
    %v1580 = vmul.f32 %v1567, 0.125
    %v1581 = vmul.f32 %v1569, 0.125
    %v1582 = vmul.f32 %v1571, 0.125
    %v1583 = vmul.f32 %v1573, 0.125
    %v1584 = vmul.f32 %v1575, 0.125
    %v1585 = vmul.f32 %v1577, 0.125
    %v1586 = vmul.f32 %v1578, %v1578
    %v1587 = vmul.f32 %v1579, %v1579
    %v1588 = vmul.f32 %v1580, %v1580
    %v1589 = vmul.f32 %v1581, %v1581
    %v1590 = vmul.f32 %v1582, %v1582
    %v1591 = vmul.f32 %v1583, %v1583
    %v1592 = vmul.f32 %v1584, %v1584
    %v1593 = vmul.f32 %v1585, %v1585
    %v1594 = vsub.f32 0.125, %v1586
    %v1595 = vsub.f32 0.125, %v1587
    %v1596 = vsub.f32 0.125, %v1588
    %v1597 = vsub.f32 0.125, %v1589
    %v1598 = vsub.f32 0.125, %v1590
    %v1599 = vsub.f32 0.125, %v1591
    %v1600 = vsub.f32 0.125, %v1592
    %v1601 = vsub.f32 0.125, %v1593
    %v1602 = vsub.f32 %v1554, %v1578
    %v1603 = vsub.f32 %v1555, %v1579
    %v1604 = vsub.f32 %v1556, %v1580
    %v1605 = vsub.f32 %v1557, %v1581
    %v1606 = vsub.f32 %v1558, %v1582
    %v1607 = vsub.f32 %v1559, %v1583
    %v1608 = vsub.f32 %v1560, %v1584
    %v1609 = vsub.f32 %v1561, %v1585
    %v1610 = vadd.f32 %v1594, 1e-05
    %v1611 = vadd.f32 %v1595, 1e-05
    %v1612 = vadd.f32 %v1596, 1e-05
    %v1613 = vadd.f32 %v1597, 1e-05
    %v1614 = vadd.f32 %v1598, 1e-05
    %v1615 = vadd.f32 %v1599, 1e-05
    %v1616 = vadd.f32 %v1600, 1e-05
    %v1617 = vadd.f32 %v1601, 1e-05
    %v1618 = vrsqrt.pop %v1610
    %v1619 = vrsqrt.pop %v1611
    %v1620 = vrsqrt.pop %v1612
    %v1621 = vrsqrt.pop %v1613
    %v1622 = vrsqrt.pop %v1614
    %v1623 = vrsqrt.pop %v1615
    %v1624 = vrsqrt.pop %v1616
    %v1625 = vrsqrt.pop %v1617
    %v1626 = vmul.f32 %v1602, %v1618
    %v1627 = vmul.f32 %v1603, %v1619
    %v1628 = vmul.f32 %v1604, %v1620
    %v1629 = vmul.f32 %v1605, %v1621
    %v1630 = vmul.f32 %v1606, %v1622
    %v1631 = vmul.f32 %v1607, %v1623
    %v1632 = vmul.f32 %v1608, %v1624
    %v1633 = vmul.f32 %v1609, %v1625
    %1634 = vst [vmem:[%s5] sm:$0xff] %v1626
    %1635 = vst [vmem:[%s5 + $0x8] sm:$0xff] %v1627
    %1636 = vst [vmem:[%s5 + $0x10] sm:$0xff] %v1628
    %1637 = vst [vmem:[%s5 + $0x18] sm:$0xff] %v1629
    %1638 = vst [vmem:[%s5 + $0x20] sm:$0xff] %v1630
    %1639 = vst [vmem:[%s5 + $0x28] sm:$0xff] %v1631
    %1640 = vst [vmem:[%s5 + $0x30] sm:$0xff] %v1632
    %1641 = vst [vmem:[%s5 + $0x38] sm:$0xff] %v1633
    // Predicated region
    $region38: #{_lambda_.1} parent=1 // pred_check
      _
    $region39: #{_lambda_.1} parent=1 // pred_check_branch
      %1643 = sbr.rel (0) target = $region41
    $region40: #{_lambda_.1} parent=1 // pred_region
      _
    $region41: #{_lambda_.1} parent=1 // pred_fallthru
      _
    // Predicated region
    $region42: #{_lambda_.1} parent=1 // pred_check
      _
    $region43: #{_lambda_.1} parent=1 // pred_check_branch
      %1645 = sbr.rel (0) target = $region45
    $region44: #{_lambda_.1} parent=1 // pred_region
      _
    $region45: #{_lambda_.1} parent=1 // pred_fallthru
      _
    %1646 = vsyncpa [#allocation3], 1
    %1647 = vsyncpa [#allocation5], 1
    %1648 = vsyncpa [#allocation8], 1

</llo_original>
